<compile_context>
chip_gen: v7x
topology: tpu7x:2x2x1
jax: 0.10.0
libtpu: 0.0.40
codegen_flags: <defaults>
</compile_context>

<pallas_src>
import functools

import jax
import jax.numpy as jnp
from jax import lax
from jax.experimental import pallas as pl
from jax.experimental.pallas import tpu as pltpu

EPS = 1e-5
_MISH_CLAMP = 20.0  # exp(y) overflow guard; mish(y) ~= y above this anyway


# ----------------------------- Fused kernel -------------------------------- #
def fused_potential_kernel(x_ref, w1t_ref, shift_ref, w2t_ref, b2_ref,
                           mask_ref, o_ref, ypad_ref, col_ref, *, W):
    # x_ref:     (Nb, Cin, HW)            f32  channels-major input (reshape of NCHW)
    # w1t_ref:   (Cout, Cin)              f32  1x1 conv weight^T, BN scale folded in
    # shift_ref: (Cout, 1)                f32  folded conv1 bias + BN shift
    # w2t_ref:   (Cout, 9*Cout)           bf16 merged block-diagonal 3x3 weights
    # b2_ref:    (Cout, 1)                f32  merged 3x3 conv biases (concat order)
    # mask_ref:  (2, HW)                  f32  w-boundary masks: row0 = (w>=1), row1 = (w<=W-2)
    # o_ref:     (Nb, Cout, HW)           f32  output (flat NCHW)
    # ypad_ref:  (Nb, Cout, 2*LPAD+HW)    f32  zero-halo-padded stage-1 activation
    # col_ref:   (9*Cout, Nb*HW)          bf16 im2col buffer for the single matmul
    Nb, Cin, HW = x_ref.shape
    Cout = o_ref.shape[1]
    LPAD = (ypad_ref.shape[2] - HW) // 2   # 128-aligned interior lane offset
    halo = W + 1                           # max |flat shift| of any 3x3 tap

    mask_l = mask_ref[0:1, :]              # invalid where w == 0     (dx = -1 taps)
    mask_r = mask_ref[1:2, :]              # invalid where w == W - 1 (dx = +1 taps)

    for n in range(Nb):                    # static unroll over images in this block
        # ---- stage 1: 1x1 conv + folded BN as Cin broadcast-FMAs (VPU) ------
        y = shift_ref[...] + w1t_ref[:, 0:1] * x_ref[n, 0:1, :]
        for ci in range(1, Cin):
            y = y + w1t_ref[:, ci:ci + 1] * x_ref[n, ci:ci + 1, :]

        # ---- Mish: one transcendental + EUP approx reciprocal ---------------
        # (For finite inputs only; y = -inf would give NaN on the fast path.)
        u = jnp.exp(jnp.minimum(y, _MISH_CLAMP))
        t = u * (u + 2.0)
        y = jnp.where(y > _MISH_CLAMP, y,
                      y * (t * pl.reciprocal(t + 2.0, approx=True)))

        # ---- zero-halo slab: zero ONLY the halo strips, then the interior ---
        # (per-step, not program_id==0-guarded: required under megacore.)
        ypad_ref[n, :, LPAD - halo:LPAD] = jnp.zeros((Cout, halo), jnp.float32)
        ypad_ref[n, :, LPAD + HW:LPAD + HW + halo] = jnp.zeros(
            (Cout, halo), jnp.float32)
        ypad_ref[n, :, LPAD:LPAD + HW] = y          # 128-aligned lane-dense store

        # ---- im2col: 9 lane-shifted (Cout, HW) windows -> bf16 buffer -------
        for k in range(9):
            dy, dx = k // 3 - 1, k % 3 - 1
            s = dy * W + dx                          # flat spatial shift of tap k
            tap = ypad_ref[n, :, LPAD + s:LPAD + s + HW]
            if dx == -1:                             # row-wrap columns -> zero
                tap = tap * mask_l
            elif dx == 1:
                tap = tap * mask_r
            col_ref[k * Cout:(k + 1) * Cout, n * HW:(n + 1) * HW] = (
                tap.astype(jnp.bfloat16))

    # ---- stage 2: ONE (Cout, 9*Cout) @ (9*Cout, Nb*HW) MXU matmul ----------
    out = jnp.dot(w2t_ref[...], col_ref[...],
                  preferred_element_type=jnp.float32) + b2_ref[...]
    for n in range(Nb):
        o_ref[n] = out[:, n * HW:(n + 1) * HW]       # 256-lane-dense stores


# ----------------------------- Wrapper -------------------------------------- #
@functools.partial(jax.jit, static_argnames=("num_heads", "images_per_step"))
def potential_block(x_nchw, params, num_heads=4, images_per_step=1):
    w1, b1, gamma, beta, mean, var, w2, b2 = params
    N, Cin, H, W = x_nchw.shape
    Cout = w1.shape[1]
    hd = Cout // num_heads
    HW = H * W
    Nb = images_per_step                    # use 8-64 for production batches
    assert N % Nb == 0, "batch must be divisible by images_per_step"

    # NCHW -> (N, Cin, H*W): channels-major, a pure reshape (no transpose).
    x_rows = x_nchw.reshape(N, Cin, HW)

    # Fold eval-mode BN into the 1x1 conv:  y = x . (w1*scale) + shift.
    scale = gamma / jnp.sqrt(var + EPS)
    shift = (b1 - mean) * scale + beta
    w1t = (w1 * scale[None, :]).T                           # (Cout, Cin)

    # Merge per-head 3x3 weights into one block-diagonal conv, laid out as
    # (Cout, 9*Cout) so stage 2 is a single matmul whose output is already in
    # torch.cat(dim=1) channel order.  bf16 operands for the MXU.
    w2m = jnp.zeros((3, 3, Cout, Cout), jnp.float32)
    for h in range(num_heads):
        w2m = w2m.at[:, :, h * hd:(h + 1) * hd, h * hd:(h + 1) * hd].set(w2[h])
    w2t = jnp.transpose(w2m, (3, 0, 1, 2)).reshape(Cout, 9 * Cout)
    w2t = w2t.astype(jnp.bfloat16)
    b2m = b2.reshape(Cout, 1)

    # w-boundary validity masks for the dx = -1 / +1 taps (h-boundary is
    # handled by the zero halo inside the kernel).
    wpos = jnp.arange(HW, dtype=jnp.int32) % W
    mask_lr = jnp.stack([(wpos >= 1), (wpos <= W - 2)]).astype(jnp.float32)

    LPAD = ((W + 1 + 127) // 128) * 128     # 128-aligned interior lane offset

    kernel = functools.partial(fused_potential_kernel, W=W)

    out = pl.pallas_call(
        kernel,
        out_shape=jax.ShapeDtypeStruct((N, Cout, HW), jnp.float32),
        grid_spec=pltpu.PrefetchScalarGridSpec(
            num_scalar_prefetch=0,
            grid=(N // Nb,),
            in_specs=[
                pl.BlockSpec((Nb, Cin, HW), lambda i: (i, 0, 0)),
                pl.BlockSpec((Cout, Cin), lambda i: (0, 0)),
                pl.BlockSpec((Cout, 1), lambda i: (0, 0)),
                pl.BlockSpec((Cout, 9 * Cout), lambda i: (0, 0)),
                pl.BlockSpec((Cout, 1), lambda i: (0, 0)),
                pl.BlockSpec((2, HW), lambda i: (0, 0)),
            ],
            out_specs=pl.BlockSpec((Nb, Cout, HW), lambda i: (i, 0, 0)),
            scratch_shapes=[
                pltpu.VMEM((Nb, Cout, 2 * LPAD + HW), jnp.float32),  # padded act
                pltpu.VMEM((9 * Cout, Nb * HW), jnp.bfloat16),       # im2col
            ]),
        compiler_params=pltpu.CompilerParams(
            dimension_semantics=("parallel",)),
    )(x_rows, w1t, shift[:, None], w2t, b2m, mask_lr)

    # (N, Cout, H*W) -> NCHW: reshape only; channels already in cat(dim=1) order.
    return out.reshape(N, Cout, H, W)


# ----------------------------- Reference (pure JAX, f32) -------------------- #
def potential_block_ref(x_nchw, params, num_heads=4):
    w1, b1, gamma, beta, mean, var, w2, b2 = params
    Cout = w1.shape[1]
    hd = Cout // num_heads
    # conv1 (1x1), torch layout OIHW
    w1_oihw = w1.T[:, :, None, None]
    y = lax.conv_general_dilated(x_nchw, w1_oihw, (1, 1), "VALID",
                                 dimension_numbers=("NCHW", "OIHW", "NCHW"))
    y = y + b1[None, :, None, None]
    y = (y - mean[None, :, None, None]) / jnp.sqrt(var + EPS)[None, :, None, None]
    y = y * gamma[None, :, None, None] + beta[None, :, None, None]
    y = y * jnp.tanh(jax.nn.softplus(y))  # Mish
    outs = []
    for h in range(num_heads):
        xh = y[:, h * hd:(h + 1) * hd]
        wh = jnp.transpose(w2[h], (3, 2, 0, 1))  # (ky,kx,cin,cout)->(O,I,ky,kx)
        oh = lax.conv_general_dilated(xh, wh, (1, 1), ((1, 1), (1, 1)),
                                      dimension_numbers=("NCHW", "OIHW", "NCHW"))
        outs.append(oh + b2[h, 0][None, :, None, None])
    return jnp.concatenate(outs, axis=1)


# ----------------------------- Main ----------------------------------------- #
if __name__ == "__main__":
    N, Cin, H, W = 2, 4, 16, 16
    num_heads = 4
    Cout = 32
    hd = Cout // num_heads

    key = jax.random.PRNGKey(0)
    ks = jax.random.split(key, 8)

    x = jax.random.normal(ks[0], (N, Cin, H, W), jnp.float32)

    # Deterministic synthetic parameters (shapes match the torch module).
    w1 = 0.2 * jax.random.normal(ks[1], (Cin, Cout), jnp.float32)      # 1x1 conv
    b1 = 0.1 * jax.random.normal(ks[2], (Cout,), jnp.float32)
    gamma = 1.0 + 0.1 * jax.random.normal(ks[3], (Cout,), jnp.float32)
    beta = 0.1 * jax.random.normal(ks[4], (Cout,), jnp.float32)
    mean = 0.05 * jax.random.normal(ks[5], (Cout,), jnp.float32)
    var = jnp.abs(1.0 + 0.1 * jax.random.normal(ks[6], (Cout,), jnp.float32))
    # per-head 3x3 conv weights, layout (head, ky, kx, cin, cout)
    w2 = 0.1 * jax.random.normal(ks[7], (num_heads, 3, 3, hd, hd), jnp.float32)
    b2 = 0.05 * jnp.arange(num_heads * hd, dtype=jnp.float32).reshape(
        num_heads, 1, hd) / (num_heads * hd)

    params = (w1, b1, gamma, beta, mean, var, w2, b2)

    out = potential_block(x, params, num_heads=num_heads, images_per_step=1)
    out = jax.block_until_ready(out)

    ref = potential_block_ref(x, params, num_heads=num_heads)
    assert out.shape == (N, Cout, H, W), out.shape
    # Tolerance accounts for bf16 MXU operands in stage 2 (per perf guidance);
    # all elementwise math is f32.
    assert jnp.allclose(out, ref, atol=3e-2, rtol=3e-2), \
        float(jnp.max(jnp.abs(out - ref)))

    print("KERNEL_OK")
</pallas_src>

<mosaic_0001>
module attributes {stable_mosaic.version = 11 : i64} {
  func.func @fused_potential_kernel(%arg0: i32, %arg1: memref<1x4x256xf32, #tpu.memory_space<vmem>>, %arg2: memref<32x4xf32, #tpu.memory_space<vmem>>, %arg3: memref<32x1xf32, #tpu.memory_space<vmem>>, %arg4: memref<32x288xbf16, #tpu.memory_space<vmem>>, %arg5: memref<32x1xf32, #tpu.memory_space<vmem>>, %arg6: memref<2x256xf32, #tpu.memory_space<vmem>>, %arg7: memref<1x32x256xf32, #tpu.memory_space<vmem>>, %arg8: memref<1x32x512xf32, #tpu.memory_space<vmem>>, %arg9: memref<288x256xbf16, #tpu.memory_space<vmem>>) attributes {dimension_semantics = [#tpu.dimension_semantics<parallel>], iteration_bounds = array<i64: 2>, scalar_prefetch = 0 : i64, scratch_operands = 2 : i64, tpu.core_type = #tpu.core_type<tc>, window_params = [{transform_indices = @transform_0, window_bounds = array<i64: 1, 4, 256>}, {pipeline_mode = #tpu.pipeline_mode<synchronous>, transform_indices = @transform_1, window_bounds = array<i64: 32, 4>}, {pipeline_mode = #tpu.pipeline_mode<synchronous>, transform_indices = @transform_2, window_bounds = array<i64: 32, 1>}, {pipeline_mode = #tpu.pipeline_mode<synchronous>, transform_indices = @transform_3, window_bounds = array<i64: 32, 288>}, {pipeline_mode = #tpu.pipeline_mode<synchronous>, transform_indices = @transform_4, window_bounds = array<i64: 32, 1>}, {pipeline_mode = #tpu.pipeline_mode<synchronous>, transform_indices = @transform_5, window_bounds = array<i64: 2, 256>}, {transform_indices = @transform_6, window_bounds = array<i64: 1, 32, 256>}]} {
    %c0 = arith.constant 0 : index
    %c0_0 = arith.constant 0 : index
    %0 = vector.load %arg6[%c0, %c0_0] : memref<2x256xf32, #tpu.memory_space<vmem>>, vector<1x256xf32>
    %c1 = arith.constant 1 : index
    %c0_1 = arith.constant 0 : index
    %1 = vector.load %arg6[%c1, %c0_1] : memref<2x256xf32, #tpu.memory_space<vmem>>, vector<1x256xf32>
    %c0_2 = arith.constant 0 : index
    %c0_3 = arith.constant 0 : index
    %2 = vector.load %arg3[%c0_2, %c0_3] : memref<32x1xf32, #tpu.memory_space<vmem>>, vector<32x1xf32>
    %c0_4 = arith.constant 0 : index
    %c0_5 = arith.constant 0 : index
    %3 = vector.load %arg2[%c0_4, %c0_5] : memref<32x4xf32, #tpu.memory_space<vmem>>, vector<32x1xf32>
    %c0_6 = arith.constant 0 : index
    %c0_7 = arith.constant 0 : index
    %c0_8 = arith.constant 0 : index
    %4 = vector.load %arg1[%c0_6, %c0_7, %c0_8] : memref<1x4x256xf32, #tpu.memory_space<vmem>>, vector<1x1x256xf32>
    %5 = vector.shape_cast %4 : vector<1x1x256xf32> to vector<1x256xf32>
    %6 = vector.broadcast %3 : vector<32x1xf32> to vector<32x256xf32>
    %7 = vector.broadcast %5 : vector<1x256xf32> to vector<32x256xf32>
    %8 = arith.mulf %6, %7 : vector<32x256xf32>
    %9 = vector.broadcast %2 : vector<32x1xf32> to vector<32x256xf32>
    %10 = arith.addf %9, %8 : vector<32x256xf32>
    %c0_9 = arith.constant 0 : index
    %c1_10 = arith.constant 1 : index
    %11 = vector.load %arg2[%c0_9, %c1_10] : memref<32x4xf32, #tpu.memory_space<vmem>>, vector<32x1xf32>
    %c0_11 = arith.constant 0 : index
    %c1_12 = arith.constant 1 : index
    %c0_13 = arith.constant 0 : index
    %12 = vector.load %arg1[%c0_11, %c1_12, %c0_13] : memref<1x4x256xf32, #tpu.memory_space<vmem>>, vector<1x1x256xf32>
    %13 = vector.shape_cast %12 : vector<1x1x256xf32> to vector<1x256xf32>
    %14 = vector.broadcast %11 : vector<32x1xf32> to vector<32x256xf32>
    %15 = vector.broadcast %13 : vector<1x256xf32> to vector<32x256xf32>
    %16 = arith.mulf %14, %15 : vector<32x256xf32>
    %17 = arith.addf %10, %16 : vector<32x256xf32>
    %c0_14 = arith.constant 0 : index
    %c2 = arith.constant 2 : index
    %18 = vector.load %arg2[%c0_14, %c2] : memref<32x4xf32, #tpu.memory_space<vmem>>, vector<32x1xf32>
    %c0_15 = arith.constant 0 : index
    %c2_16 = arith.constant 2 : index
    %c0_17 = arith.constant 0 : index
    %19 = vector.load %arg1[%c0_15, %c2_16, %c0_17] : memref<1x4x256xf32, #tpu.memory_space<vmem>>, vector<1x1x256xf32>
    %20 = vector.shape_cast %19 : vector<1x1x256xf32> to vector<1x256xf32>
    %21 = vector.broadcast %18 : vector<32x1xf32> to vector<32x256xf32>
    %22 = vector.broadcast %20 : vector<1x256xf32> to vector<32x256xf32>
    %23 = arith.mulf %21, %22 : vector<32x256xf32>
    %24 = arith.addf %17, %23 : vector<32x256xf32>
    %c0_18 = arith.constant 0 : index
    %c3 = arith.constant 3 : index
    %25 = vector.load %arg2[%c0_18, %c3] : memref<32x4xf32, #tpu.memory_space<vmem>>, vector<32x1xf32>
    %c0_19 = arith.constant 0 : index
    %c3_20 = arith.constant 3 : index
    %c0_21 = arith.constant 0 : index
    %26 = vector.load %arg1[%c0_19, %c3_20, %c0_21] : memref<1x4x256xf32, #tpu.memory_space<vmem>>, vector<1x1x256xf32>
    %27 = vector.shape_cast %26 : vector<1x1x256xf32> to vector<1x256xf32>
    %28 = vector.broadcast %25 : vector<32x1xf32> to vector<32x256xf32>
    %29 = vector.broadcast %27 : vector<1x256xf32> to vector<32x256xf32>
    %30 = arith.mulf %28, %29 : vector<32x256xf32>
    %31 = arith.addf %24, %30 : vector<32x256xf32>
    %cst = arith.constant 2.000000e+01 : f32
    %32 = vector.broadcast %cst : f32 to vector<32x256xf32>
    %33 = arith.minimumf %31, %32 : vector<32x256xf32>
    %34 = math.exp %33 : vector<32x256xf32>
    %cst_22 = arith.constant 2.000000e+00 : f32
    %35 = vector.broadcast %cst_22 : f32 to vector<32x256xf32>
    %36 = arith.addf %34, %35 : vector<32x256xf32>
    %37 = arith.mulf %34, %36 : vector<32x256xf32>
    %cst_23 = arith.constant 2.000000e+01 : f32
    %38 = vector.broadcast %cst_23 : f32 to vector<32x256xf32>
    %39 = arith.cmpf ogt, %31, %38 : vector<32x256xf32>
    %cst_24 = arith.constant 2.000000e+00 : f32
    %40 = vector.broadcast %cst_24 : f32 to vector<32x256xf32>
    %41 = arith.addf %37, %40 : vector<32x256xf32>
    %42 = tpu.reciprocal %41 {approx = true} : vector<32x256xf32> -> vector<32x256xf32>
    %43 = arith.mulf %37, %42 : vector<32x256xf32>
    %44 = arith.mulf %31, %43 : vector<32x256xf32>
    %45 = arith.select %39, %31, %44 : vector<32x256xi1>, vector<32x256xf32>
    %cst_25 = arith.constant 0.000000e+00 : f32
    %46 = vector.broadcast %cst_25 : f32 to vector<32x17xf32>
    %c0_26 = arith.constant 0 : index
    %c0_27 = arith.constant 0 : index
    %c111 = arith.constant 111 : index
    %47 = vector.load %arg8[%c0_26, %c0_27, %c111] : memref<1x32x512xf32, #tpu.memory_space<vmem>>, vector<1x32x17xf32>
    %48 = vector.shape_cast %47 : vector<1x32x17xf32> to vector<32x17xf32>
    %49 = vector.shape_cast %46 : vector<32x17xf32> to vector<1x32x17xf32>
    tpu.vector_store %arg8[%c0_26, %c0_27, %c111], %49 {strides = array<i32>} : memref<1x32x512xf32, #tpu.memory_space<vmem>>, vector<1x32x17xf32>,
    %cst_28 = arith.constant 0.000000e+00 : f32
    %50 = vector.broadcast %cst_28 : f32 to vector<32x17xf32>
    %c0_29 = arith.constant 0 : index
    %c0_30 = arith.constant 0 : index
    %c384 = arith.constant 384 : index
    %51 = vector.load %arg8[%c0_29, %c0_30, %c384] : memref<1x32x512xf32, #tpu.memory_space<vmem>>, vector<1x32x17xf32>
    %52 = vector.shape_cast %51 : vector<1x32x17xf32> to vector<32x17xf32>
    %53 = vector.shape_cast %50 : vector<32x17xf32> to vector<1x32x17xf32>
    tpu.vector_store %arg8[%c0_29, %c0_30, %c384], %53 {strides = array<i32>} : memref<1x32x512xf32, #tpu.memory_space<vmem>>, vector<1x32x17xf32>,
    %c0_31 = arith.constant 0 : index
    %c0_32 = arith.constant 0 : index
    %c128 = arith.constant 128 : index
    %54 = vector.load %arg8[%c0_31, %c0_32, %c128] : memref<1x32x512xf32, #tpu.memory_space<vmem>>, vector<1x32x256xf32>
    %55 = vector.shape_cast %54 : vector<1x32x256xf32> to vector<32x256xf32>
    %56 = vector.shape_cast %45 : vector<32x256xf32> to vector<1x32x256xf32>
    tpu.vector_store %arg8[%c0_31, %c0_32, %c128], %56 {strides = array<i32>} : memref<1x32x512xf32, #tpu.memory_space<vmem>>, vector<1x32x256xf32>,
    %c0_33 = arith.constant 0 : index
    %c0_34 = arith.constant 0 : index
    %c111_35 = arith.constant 111 : index
    %57 = vector.load %arg8[%c0_33, %c0_34, %c111_35] : memref<1x32x512xf32, #tpu.memory_space<vmem>>, vector<1x32x256xf32>
    %58 = vector.shape_cast %57 : vector<1x32x256xf32> to vector<32x256xf32>
    %59 = vector.broadcast %0 : vector<1x256xf32> to vector<32x256xf32>
    %60 = arith.mulf %58, %59 : vector<32x256xf32>
    %61 = arith.truncf %60 : vector<32x256xf32> to vector<32x256xbf16>
    %c0_36 = arith.constant 0 : index
    %c0_37 = arith.constant 0 : index
    %62 = vector.load %arg9[%c0_36, %c0_37] : memref<288x256xbf16, #tpu.memory_space<vmem>>, vector<32x256xbf16>
    tpu.vector_store %arg9[%c0_36, %c0_37], %61 {strides = array<i32>} : memref<288x256xbf16, #tpu.memory_space<vmem>>, vector<32x256xbf16>,
    %c0_38 = arith.constant 0 : index
    %c0_39 = arith.constant 0 : index
    %c112 = arith.constant 112 : index
    %63 = vector.load %arg8[%c0_38, %c0_39, %c112] : memref<1x32x512xf32, #tpu.memory_space<vmem>>, vector<1x32x256xf32>
    %64 = vector.shape_cast %63 : vector<1x32x256xf32> to vector<32x256xf32>
    %65 = arith.truncf %64 : vector<32x256xf32> to vector<32x256xbf16>
    %c32 = arith.constant 32 : index
    %c0_40 = arith.constant 0 : index
    %66 = vector.load %arg9[%c32, %c0_40] : memref<288x256xbf16, #tpu.memory_space<vmem>>, vector<32x256xbf16>
    tpu.vector_store %arg9[%c32, %c0_40], %65 {strides = array<i32>} : memref<288x256xbf16, #tpu.memory_space<vmem>>, vector<32x256xbf16>,
    %c0_41 = arith.constant 0 : index
    %c0_42 = arith.constant 0 : index
    %c113 = arith.constant 113 : index
    %67 = vector.load %arg8[%c0_41, %c0_42, %c113] : memref<1x32x512xf32, #tpu.memory_space<vmem>>, vector<1x32x256xf32>
    %68 = vector.shape_cast %67 : vector<1x32x256xf32> to vector<32x256xf32>
    %69 = vector.broadcast %1 : vector<1x256xf32> to vector<32x256xf32>
    %70 = arith.mulf %68, %69 : vector<32x256xf32>
    %71 = arith.truncf %70 : vector<32x256xf32> to vector<32x256xbf16>
    %c64 = arith.constant 64 : index
    %c0_43 = arith.constant 0 : index
    %72 = vector.load %arg9[%c64, %c0_43] : memref<288x256xbf16, #tpu.memory_space<vmem>>, vector<32x256xbf16>
    tpu.vector_store %arg9[%c64, %c0_43], %71 {strides = array<i32>} : memref<288x256xbf16, #tpu.memory_space<vmem>>, vector<32x256xbf16>,
    %c0_44 = arith.constant 0 : index
    %c0_45 = arith.constant 0 : index
    %c127 = arith.constant 127 : index
    %73 = vector.load %arg8[%c0_44, %c0_45, %c127] : memref<1x32x512xf32, #tpu.memory_space<vmem>>, vector<1x32x256xf32>
    %74 = vector.shape_cast %73 : vector<1x32x256xf32> to vector<32x256xf32>
    %75 = vector.broadcast %0 : vector<1x256xf32> to vector<32x256xf32>
    %76 = arith.mulf %74, %75 : vector<32x256xf32>
    %77 = arith.truncf %76 : vector<32x256xf32> to vector<32x256xbf16>
    %c96 = arith.constant 96 : index
    %c0_46 = arith.constant 0 : index
    %78 = vector.load %arg9[%c96, %c0_46] : memref<288x256xbf16, #tpu.memory_space<vmem>>, vector<32x256xbf16>
    tpu.vector_store %arg9[%c96, %c0_46], %77 {strides = array<i32>} : memref<288x256xbf16, #tpu.memory_space<vmem>>, vector<32x256xbf16>,
    %c0_47 = arith.constant 0 : index
    %c0_48 = arith.constant 0 : index
    %c128_49 = arith.constant 128 : index
    %79 = vector.load %arg8[%c0_47, %c0_48, %c128_49] : memref<1x32x512xf32, #tpu.memory_space<vmem>>, vector<1x32x256xf32>
    %80 = vector.shape_cast %79 : vector<1x32x256xf32> to vector<32x256xf32>
    %81 = arith.truncf %80 : vector<32x256xf32> to vector<32x256xbf16>
    %c128_50 = arith.constant 128 : index
    %c0_51 = arith.constant 0 : index
    %82 = vector.load %arg9[%c128_50, %c0_51] : memref<288x256xbf16, #tpu.memory_space<vmem>>, vector<32x256xbf16>
    tpu.vector_store %arg9[%c128_50, %c0_51], %81 {strides = array<i32>} : memref<288x256xbf16, #tpu.memory_space<vmem>>, vector<32x256xbf16>,
    %c0_52 = arith.constant 0 : index
    %c0_53 = arith.constant 0 : index
    %c129 = arith.constant 129 : index
    %83 = vector.load %arg8[%c0_52, %c0_53, %c129] : memref<1x32x512xf32, #tpu.memory_space<vmem>>, vector<1x32x256xf32>
    %84 = vector.shape_cast %83 : vector<1x32x256xf32> to vector<32x256xf32>
    %85 = vector.broadcast %1 : vector<1x256xf32> to vector<32x256xf32>
    %86 = arith.mulf %84, %85 : vector<32x256xf32>
    %87 = arith.truncf %86 : vector<32x256xf32> to vector<32x256xbf16>
    %c160 = arith.constant 160 : index
    %c0_54 = arith.constant 0 : index
    %88 = vector.load %arg9[%c160, %c0_54] : memref<288x256xbf16, #tpu.memory_space<vmem>>, vector<32x256xbf16>
    tpu.vector_store %arg9[%c160, %c0_54], %87 {strides = array<i32>} : memref<288x256xbf16, #tpu.memory_space<vmem>>, vector<32x256xbf16>,
    %c0_55 = arith.constant 0 : index
    %c0_56 = arith.constant 0 : index
    %c143 = arith.constant 143 : index
    %89 = vector.load %arg8[%c0_55, %c0_56, %c143] : memref<1x32x512xf32, #tpu.memory_space<vmem>>, vector<1x32x256xf32>
    %90 = vector.shape_cast %89 : vector<1x32x256xf32> to vector<32x256xf32>
    %91 = vector.broadcast %0 : vector<1x256xf32> to vector<32x256xf32>
    %92 = arith.mulf %90, %91 : vector<32x256xf32>
    %93 = arith.truncf %92 : vector<32x256xf32> to vector<32x256xbf16>
    %c192 = arith.constant 192 : index
    %c0_57 = arith.constant 0 : index
    %94 = vector.load %arg9[%c192, %c0_57] : memref<288x256xbf16, #tpu.memory_space<vmem>>, vector<32x256xbf16>
    tpu.vector_store %arg9[%c192, %c0_57], %93 {strides = array<i32>} : memref<288x256xbf16, #tpu.memory_space<vmem>>, vector<32x256xbf16>,
    %c0_58 = arith.constant 0 : index
    %c0_59 = arith.constant 0 : index
    %c144 = arith.constant 144 : index
    %95 = vector.load %arg8[%c0_58, %c0_59, %c144] : memref<1x32x512xf32, #tpu.memory_space<vmem>>, vector<1x32x256xf32>
    %96 = vector.shape_cast %95 : vector<1x32x256xf32> to vector<32x256xf32>
    %97 = arith.truncf %96 : vector<32x256xf32> to vector<32x256xbf16>
    %c224 = arith.constant 224 : index
    %c0_60 = arith.constant 0 : index
    %98 = vector.load %arg9[%c224, %c0_60] : memref<288x256xbf16, #tpu.memory_space<vmem>>, vector<32x256xbf16>
    tpu.vector_store %arg9[%c224, %c0_60], %97 {strides = array<i32>} : memref<288x256xbf16, #tpu.memory_space<vmem>>, vector<32x256xbf16>,
    %c0_61 = arith.constant 0 : index
    %c0_62 = arith.constant 0 : index
    %c145 = arith.constant 145 : index
    %99 = vector.load %arg8[%c0_61, %c0_62, %c145] : memref<1x32x512xf32, #tpu.memory_space<vmem>>, vector<1x32x256xf32>
    %100 = vector.shape_cast %99 : vector<1x32x256xf32> to vector<32x256xf32>
    %101 = vector.broadcast %1 : vector<1x256xf32> to vector<32x256xf32>
    %102 = arith.mulf %100, %101 : vector<32x256xf32>
    %103 = arith.truncf %102 : vector<32x256xf32> to vector<32x256xbf16>
    %c256 = arith.constant 256 : index
    %c0_63 = arith.constant 0 : index
    %104 = vector.load %arg9[%c256, %c0_63] : memref<288x256xbf16, #tpu.memory_space<vmem>>, vector<32x256xbf16>
    tpu.vector_store %arg9[%c256, %c0_63], %103 {strides = array<i32>} : memref<288x256xbf16, #tpu.memory_space<vmem>>, vector<32x256xbf16>,
    %c0_64 = arith.constant 0 : index
    %c0_65 = arith.constant 0 : index
    %105 = vector.load %arg4[%c0_64, %c0_65] : memref<32x288xbf16, #tpu.memory_space<vmem>>, vector<32x288xbf16>
    %c0_66 = arith.constant 0 : index
    %c0_67 = arith.constant 0 : index
    %106 = vector.load %arg9[%c0_66, %c0_67] : memref<288x256xbf16, #tpu.memory_space<vmem>>, vector<288x256xbf16>
    %cst_68 = arith.constant dense<0.000000e+00> : vector<32x256xf32>
    %107 = tpu.matmul %105, %106, %cst_68 {dimension_numbers = #tpu.dot_dimension_numbers<[1], [0], [0], [1], [0, 0, 1, 1], [], []>} : vector<32x288xbf16>, vector<288x256xbf16>, vector<32x256xf32> -> vector<32x256xf32>
    %c0_69 = arith.constant 0 : index
    %c0_70 = arith.constant 0 : index
    %108 = vector.load %arg5[%c0_69, %c0_70] : memref<32x1xf32, #tpu.memory_space<vmem>>, vector<32x1xf32>
    %109 = vector.broadcast %108 : vector<32x1xf32> to vector<32x256xf32>
    %110 = arith.addf %107, %109 : vector<32x256xf32>
    %c0_71 = arith.constant 0 : index
    %c0_72 = arith.constant 0 : index
    %c0_73 = arith.constant 0 : index
    %111 = vector.load %arg7[%c0_71, %c0_72, %c0_73] : memref<1x32x256xf32, #tpu.memory_space<vmem>>, vector<1x32x256xf32>
    %112 = vector.shape_cast %111 : vector<1x32x256xf32> to vector<32x256xf32>
    %113 = vector.shape_cast %110 : vector<32x256xf32> to vector<1x32x256xf32>
    tpu.vector_store %arg7[%c0_71, %c0_72, %c0_73], %113 {strides = array<i32>} : memref<1x32x256xf32, #tpu.memory_space<vmem>>, vector<1x32x256xf32>,
    return
  }
  func.func @transform_0(%arg0: i32) -> (i32, i32, i32) {
    %c0_i32 = arith.constant 0 : i32
    %c0_i32_0 = arith.constant 0 : i32
    %c0_i32_1 = arith.constant 0 : i32
    return %arg0, %c0_i32, %c0_i32_0 : i32, i32, i32
  }
  func.func @transform_1(%arg0: i32) -> (i32, i32) {
    %c0_i32 = arith.constant 0 : i32
    %c0_i32_0 = arith.constant 0 : i32
    %c0_i32_1 = arith.constant 0 : i32
    return %c0_i32, %c0_i32_0 : i32, i32
  }
  func.func @transform_2(%arg0: i32) -> (i32, i32) {
    %c0_i32 = arith.constant 0 : i32
    %c0_i32_0 = arith.constant 0 : i32
    %c0_i32_1 = arith.constant 0 : i32
    return %c0_i32, %c0_i32_0 : i32, i32
  }
  func.func @transform_3(%arg0: i32) -> (i32, i32) {
    %c0_i32 = arith.constant 0 : i32
    %c0_i32_0 = arith.constant 0 : i32
    %c0_i32_1 = arith.constant 0 : i32
    return %c0_i32, %c0_i32_0 : i32, i32
  }
  func.func @transform_4(%arg0: i32) -> (i32, i32) {
    %c0_i32 = arith.constant 0 : i32
    %c0_i32_0 = arith.constant 0 : i32
    %c0_i32_1 = arith.constant 0 : i32
    return %c0_i32, %c0_i32_0 : i32, i32
  }
  func.func @transform_5(%arg0: i32) -> (i32, i32) {
    %c0_i32 = arith.constant 0 : i32
    %c0_i32_0 = arith.constant 0 : i32
    %c0_i32_1 = arith.constant 0 : i32
    return %c0_i32, %c0_i32_0 : i32, i32
  }
  func.func @transform_6(%arg0: i32) -> (i32, i32, i32) {
    %c0_i32 = arith.constant 0 : i32
    %c0_i32_0 = arith.constant 0 : i32
    %c0_i32_1 = arith.constant 0 : i32
    return %arg0, %c0_i32, %c0_i32_0 : i32, i32, i32
  }
}

</mosaic_0001>

<llo_original>
// kernel: potential_block.1
$region0: #{potential_block.1}
  #allocation0 [shape = 'u32[]', space=smem, size = 0x4, offset = 0x4, fixed_abs, tag = 'smem constant byte address 0x4 - core index']
  #allocation1 [shape = 'u32[144,128]{1,0:T(1,128)}', space=vmem, size = 0x12000, scoped, tag = 'internal scratch']
  #allocation2 [shape = 'f32[1,32,512]{2,1,0:T(8,128)}', space=vmem, size = 0x10000, scoped, tag = 'scratch operand']
  #allocation3 [shape = 'bf16[288,256]{1,0:T(16,128)(2,1)}', space=vmem, size = 0x24000, scoped, tag = 'scratch operand']
  %s0 = inlined_call_operand.vmem [shape: f32[2,4,256], index: 0, kind: input, shape index: {}]
  %s1 = inlined_call_operand.vmem [shape: f32[32,4], index: 1, kind: input, shape index: {}]
  %s2 = inlined_call_operand.vmem [shape: f32[32,1], index: 2, kind: input, shape index: {}]
  %s3 = inlined_call_operand.vmem [shape: bf16[32,288], index: 3, kind: input, shape index: {}]
  %s4 = inlined_call_operand.vmem [shape: f32[32,1], index: 4, kind: input, shape index: {}]
  %s5 = inlined_call_operand.vmem [shape: f32[2,256], index: 5, kind: input, shape index: {}]
  %s6 = inlined_call_operand.vmem [shape: f32[2,32,256], index: 6, kind: output, shape index: {}]
  %s7 = sld [smem:[#allocation0]]
  $region57: #{potential_block.1} parent=0
    _
  %s9 = ssub.s32 1, %s7
  %s10 = scalar_select 0, %s9, %s7
  loop: start=0, step=1, limit=4
  $region2: #{potential_block.1} parent=0 // loop_pre_header
    _
  $region3: #{potential_block.1} parent=0 // loop_header
    %s12 = sphi 0, %s16
    %p13 = scmp.ge.s32.totalorder %s12, 4
    %s22 = sphi 0, %s24
    %s25 = sphi 0, %s22
    %s26 = sphi 0, %s25
    %s42 = sphi 0, %s26
    %s46 = sphi 0, %s46
    %s48 = sphi 0, %s46
    %s49 = sphi 0, %s48
    %s63 = sphi 0, %s49
    %s67 = sphi 0, %s67
    %s69 = sphi 0, %s67
    %s70 = sphi 0, %s69
    %s84 = sphi 0, %s70
    %s88 = sphi 0, %s88
    %s90 = sphi 0, %s88
    %s91 = sphi 0, %s90
    %s105 = sphi 0, %s91
    %s109 = sphi 0, %s109
    %s111 = sphi 0, %s109
    %s112 = sphi 0, %s111
    %s126 = sphi 0, %s112
    %s130 = sphi 0, %s130
    %s132 = sphi 0, %s130
    %s133 = sphi 0, %s132
    %s147 = sphi 0, %s133
    %s153 = sphi 0, %s155
    %s156 = sphi 0, %s153
    %s157 = sphi 0, %s156
    %s173 = sphi 0, %s157
  $region4: #{potential_block.1} parent=0 // loop_header_branch
    %15 = sbr.rel (%p13) target = $region8
  $region5: #{potential_block.1} parent=0 // loop_body
    %s17 = ssub.s32 %s12, 1
    %s18 = ssub.s32 %s12, 2
    %s19 = sadd.s32 %s12, 1
    %s20 = ssub.s32 %s12, %s19
    %p21 = scmp.eq.s32.totalorder %s20, 0
    %s23 = sadd.s32 %s22, 1
    %s24 = scalar_select %p21, %s22, %s23
    %p27 = pneg %p21
    %p28 = scmp.eq.s32.totalorder %s12, 1
    %p29 = por %p27, %p28
    %p30 = scmp.ne.s32.totalorder %s22, %s25
    %p31 = scmp.eq.s32.totalorder %s12, 0
    %p32 = por %p30, %p31
    %p33 = scmp.ne.s32.totalorder %s22, %s25
    %p34 = scmp.eq.s32.totalorder %s17, 1
    %p35 = por %p33, %p34
    %p36 = scmp.ne.s32.totalorder %s25, %s26
    %p37 = scmp.eq.s32.totalorder %s17, 0
    %p38 = por %p36, %p37
    %p39 = scmp.ne.s32.totalorder %s25, %s26
    %p40 = scmp.eq.s32.totalorder %s18, 1
    %p41 = por %p39, %p40
    %p43 = scmp.ne.s32.totalorder %s26, %s42
    %p44 = scmp.eq.s32.totalorder %s18, 0
    %p45 = por %p43, %p44
    %s47 = sadd.s32 %s46, 1
    %p50 = scmp.eq.s32.totalorder %s12, 1
    %p51 = scmp.ne.s32.totalorder %s46, %s48
    %p52 = scmp.eq.s32.totalorder %s12, 0
    %p53 = por %p51, %p52
    %p54 = scmp.ne.s32.totalorder %s46, %s48
    %p55 = scmp.eq.s32.totalorder %s17, 1
    %p56 = por %p54, %p55
    %p57 = scmp.ne.s32.totalorder %s48, %s49
    %p58 = scmp.eq.s32.totalorder %s17, 0
    %p59 = por %p57, %p58
    %p60 = scmp.ne.s32.totalorder %s48, %s49
    %p61 = scmp.eq.s32.totalorder %s18, 1
    %p62 = por %p60, %p61
    %p64 = scmp.ne.s32.totalorder %s49, %s63
    %p65 = scmp.eq.s32.totalorder %s18, 0
    %p66 = por %p64, %p65
    %s68 = sadd.s32 %s67, 1
    %p71 = scmp.eq.s32.totalorder %s12, 1
    %p72 = scmp.ne.s32.totalorder %s67, %s69
    %p73 = scmp.eq.s32.totalorder %s12, 0
    %p74 = por %p72, %p73
    %p75 = scmp.ne.s32.totalorder %s67, %s69
    %p76 = scmp.eq.s32.totalorder %s17, 1
    %p77 = por %p75, %p76
    %p78 = scmp.ne.s32.totalorder %s69, %s70
    %p79 = scmp.eq.s32.totalorder %s17, 0
    %p80 = por %p78, %p79
    %p81 = scmp.ne.s32.totalorder %s69, %s70
    %p82 = scmp.eq.s32.totalorder %s18, 1
    %p83 = por %p81, %p82
    %p85 = scmp.ne.s32.totalorder %s70, %s84
    %p86 = scmp.eq.s32.totalorder %s18, 0
    %p87 = por %p85, %p86
    %s89 = sadd.s32 %s88, 1
    %p92 = scmp.eq.s32.totalorder %s12, 1
    %p93 = scmp.ne.s32.totalorder %s88, %s90
    %p94 = scmp.eq.s32.totalorder %s12, 0
    %p95 = por %p93, %p94
    %p96 = scmp.ne.s32.totalorder %s88, %s90
    %p97 = scmp.eq.s32.totalorder %s17, 1
    %p98 = por %p96, %p97
    %p99 = scmp.ne.s32.totalorder %s90, %s91
    %p100 = scmp.eq.s32.totalorder %s17, 0
    %p101 = por %p99, %p100
    %p102 = scmp.ne.s32.totalorder %s90, %s91
    %p103 = scmp.eq.s32.totalorder %s18, 1
    %p104 = por %p102, %p103
    %p106 = scmp.ne.s32.totalorder %s91, %s105
    %p107 = scmp.eq.s32.totalorder %s18, 0
    %p108 = por %p106, %p107
    %s110 = sadd.s32 %s109, 1
    %p113 = scmp.eq.s32.totalorder %s12, 1
    %p114 = scmp.ne.s32.totalorder %s109, %s111
    %p115 = scmp.eq.s32.totalorder %s12, 0
    %p116 = por %p114, %p115
    %p117 = scmp.ne.s32.totalorder %s109, %s111
    %p118 = scmp.eq.s32.totalorder %s17, 1
    %p119 = por %p117, %p118
    %p120 = scmp.ne.s32.totalorder %s111, %s112
    %p121 = scmp.eq.s32.totalorder %s17, 0
    %p122 = por %p120, %p121
    %p123 = scmp.ne.s32.totalorder %s111, %s112
    %p124 = scmp.eq.s32.totalorder %s18, 1
    %p125 = por %p123, %p124
    %p127 = scmp.ne.s32.totalorder %s112, %s126
    %p128 = scmp.eq.s32.totalorder %s18, 0
    %p129 = por %p127, %p128
    %s131 = sadd.s32 %s130, 1
    %p134 = scmp.eq.s32.totalorder %s12, 1
    %p135 = scmp.ne.s32.totalorder %s130, %s132
    %p136 = scmp.eq.s32.totalorder %s12, 0
    %p137 = por %p135, %p136
    %p138 = scmp.ne.s32.totalorder %s130, %s132
    %p139 = scmp.eq.s32.totalorder %s17, 1
    %p140 = por %p138, %p139
    %p141 = scmp.ne.s32.totalorder %s132, %s133
    %p142 = scmp.eq.s32.totalorder %s17, 0
    %p143 = por %p141, %p142
    %p144 = scmp.ne.s32.totalorder %s132, %s133
    %p145 = scmp.eq.s32.totalorder %s18, 1
    %p146 = por %p144, %p145
    %p148 = scmp.ne.s32.totalorder %s133, %s147
    %p149 = scmp.eq.s32.totalorder %s18, 0
    %p150 = por %p148, %p149
    %s151 = ssub.s32 %s12, %s19
    %p152 = scmp.eq.s32.totalorder %s151, 0
    %s154 = sadd.s32 %s153, 1
    %s155 = scalar_select %p152, %s153, %s154
    %p158 = pneg %p152
    %p159 = scmp.eq.s32.totalorder %s12, 1
    %p160 = por %p158, %p159
    %p161 = scmp.ne.s32.totalorder %s153, %s156
    %p162 = scmp.eq.s32.totalorder %s12, 0
    %p163 = por %p161, %p162
    %p164 = scmp.ne.s32.totalorder %s153, %s156
    %p165 = scmp.eq.s32.totalorder %s17, 1
    %p166 = por %p164, %p165
    %p167 = scmp.ne.s32.totalorder %s156, %s157
    %p168 = scmp.eq.s32.totalorder %s17, 0
    %p169 = por %p167, %p168
    %p170 = scmp.ne.s32.totalorder %s156, %s157
    %p171 = scmp.eq.s32.totalorder %s18, 1
    %p172 = por %p170, %p171
    %p174 = scmp.ne.s32.totalorder %s157, %s173
    %p175 = scmp.eq.s32.totalorder %s18, 0
    %p176 = por %p174, %p175
    %p177 = scmp.le.s32.totalorder 1, %s12
    %p178 = scmp.lt.s32.totalorder %s12, 3
    %p179 = pnand %p177, %p178
    %p180 = pneg %p179
    // Predicated region
    $region9: #{potential_block.1} parent=5 // pred_check
      _
    $region10: #{potential_block.1} parent=5 // pred_check_branch
      %182 = sbr.rel (%p179) target = $region12
    $region11: #{potential_block.1} parent=5 // pred_region
      %s183 = ssub.s32 %s12, 1
      // Predicated region
      $region13: #{potential_block.1} parent=11 // pred_check
        %p184 = pneg %p59
      $region14: #{potential_block.1} parent=11 // pred_check_branch
        %186 = sbr.rel (%p184) target = $region16
      $region15: #{potential_block.1} parent=11 // pred_region
        _
      $region16: #{potential_block.1} parent=11 // pred_fallthru
        _
      // Predicated region
      $region17: #{potential_block.1} parent=11 // pred_check
        %p187 = pneg %p80
      $region18: #{potential_block.1} parent=11 // pred_check_branch
        %189 = sbr.rel (%p187) target = $region20
      $region19: #{potential_block.1} parent=11 // pred_region
        _
      $region20: #{potential_block.1} parent=11 // pred_fallthru
        _
      // Predicated region
      $region21: #{potential_block.1} parent=11 // pred_check
        %p190 = pneg %p101
      $region22: #{potential_block.1} parent=11 // pred_check_branch
        %192 = sbr.rel (%p190) target = $region24
      $region23: #{potential_block.1} parent=11 // pred_region
        _
      $region24: #{potential_block.1} parent=11 // pred_fallthru
        _
      // Predicated region
      $region25: #{potential_block.1} parent=11 // pred_check
        %p193 = pneg %p122
      $region26: #{potential_block.1} parent=11 // pred_check_branch
        %195 = sbr.rel (%p193) target = $region28
      $region27: #{potential_block.1} parent=11 // pred_region
        _
      $region28: #{potential_block.1} parent=11 // pred_fallthru
        _
      // Predicated region
      $region29: #{potential_block.1} parent=11 // pred_check
        %p196 = pneg %p143
      $region30: #{potential_block.1} parent=11 // pred_check_branch
        %198 = sbr.rel (%p196) target = $region32
      $region31: #{potential_block.1} parent=11 // pred_region
        _
      $region32: #{potential_block.1} parent=11 // pred_fallthru
        _
    $region12: #{potential_block.1} parent=5 // pred_fallthru
      _
    %p199 = scmp.lt.s32.totalorder %s12, 2
    // Predicated region
    $region33: #{potential_block.1} parent=5 // pred_check
      %p200 = pneg %p199
    $region34: #{potential_block.1} parent=5 // pred_check_branch
      %202 = sbr.rel (%p200) target = $region36
    $region35: #{potential_block.1} parent=5 // pred_region
      // Predicated region
      $region37: #{potential_block.1} parent=35 // pred_check
        %p203 = pneg %p32
      $region38: #{potential_block.1} parent=35 // pred_check_branch
        %205 = sbr.rel (%p203) target = $region40
      $region39: #{potential_block.1} parent=35 // pred_region
        %p206 = scmp.lt.s32.totalorder %s12, 1
        %s207 = scalar_select %p206, %s12, 1
        %s208 = smul.addr %s207, 2
        %s209 = smul.addr %s208, 4
        %s210 = scalar_lea.vmem %s0, %s209
      $region40: #{potential_block.1} parent=35 // pred_fallthru
        _
    $region36: #{potential_block.1} parent=5 // pred_fallthru
      _
    %p211 = scmp.le.s32.totalorder 1, %s12
    %p212 = scmp.lt.s32.totalorder %s12, 3
    %p213 = pnand %p211, %p212
    %p214 = pneg %p213
    // Predicated region
    $region41: #{potential_block.1} parent=5 // pred_check
      _
    $region42: #{potential_block.1} parent=5 // pred_check_branch
      %216 = sbr.rel (%p213) target = $region44
    $region43: #{potential_block.1} parent=5 // pred_region
      %s217 = ssub.s32 %s12, 1
      %p218 = scmp.lt.s32.totalorder %s17, 1
      %s219 = scalar_select %p218, %s17, 1
      %s220 = smul.addr %s219, 2
      %s221 = smul.addr %s220, 4
      %s222 = scalar_lea.vmem %s0, %s221
      %p223 = pneg %p38
      %p224 = pneg %p35
      %p225 = pneg %p59
      %p226 = pneg %p56
      %p227 = pneg %p80
      %p228 = pneg %p77
      %p229 = pneg %p101
      %p230 = pneg %p98
      %p231 = pneg %p122
      %p232 = pneg %p119
      %p233 = pneg %p143
      %p234 = pneg %p140
      %p235 = pneg %p169
      %p236 = pneg %p166
      %p237 = scmp.lt.s32.totalorder %s17, 1
      %s238 = scalar_select %p237, %s17, 1
      %s239 = smul.addr %s238, 8
      %s240 = smul.addr %s239, 8
      %s241 = scalar_lea.vmem %s6, %s240
      %p242 = scmp.lt.s32.totalorder %s17, 1
      %s243 = scalar_select %p242, %s17, 1
      %s244 = smul.addr %s243, 2
      %s245 = smul.addr %s244, 4
      %s246 = scalar_lea.vmem %s0, %s245
      %p247 = scmp.lt.s32.totalorder %s17, 1
      %s248 = scalar_select %p247, %s17, 1
      %s249 = smul.addr %s248, 8
      %s250 = smul.addr %s249, 8
      %s251 = scalar_lea.vmem %s6, %s250
      %v253 = vld [vmem:[%s5] ss:$2 sm:$0x3]
      %s254 = scalar_lea.vmem %s5, 1
      %v255 = vld [vmem:[%s254] ss:$2 sm:$0x3]
      %v256 = vld [vmem:[%s2] sm:$0xff]
      %v257 = vld [vmem:[%s2 + $0x8] sm:$0xff]
      %v258 = vld [vmem:[%s2 + $0x10] sm:$0xff]
      %v259 = vld [vmem:[%s2 + $0x18] sm:$0xff]
      %v260 = vld [vmem:[%s1] sm:$0xff]
      %v261 = vld [vmem:[%s1 + $0x8] sm:$0xff]
      %v262 = vld [vmem:[%s1 + $0x10] sm:$0xff]
      %v263 = vld [vmem:[%s1 + $0x18] sm:$0xff]
      %v264 = vld [vmem:[%s246] ss:$4 sm:$0x3]
      %266 = vset.pattern.permute.xlu0 0
      %267 = vperm.xlu0 %266, %v260
      %v268 = vpop.permute.xlu0 %267
      %271 = vset.pattern.permute.xlu0 0
      %272 = vperm.xlu0 %271, %v261
      %v273 = vpop.permute.xlu0 %272
      %276 = vset.pattern.permute.xlu0 0
      %277 = vperm.xlu0 %276, %v262
      %v278 = vpop.permute.xlu0 %277
      %281 = vset.pattern.permute.xlu0 0
      %282 = vperm.xlu0 %281, %v263
      %v283 = vpop.permute.xlu0 %282
      %v286 = vlaneseq
      %v287 = vshrl.u32 %v286, 7
      %v288 = vsub.s32 0, %v287
      %v289 = vrot.slane %v264, %v288
      %v290 = vlaneseq
      %v291 = vshrl.u32 %v290, 7
      %v292 = vsub.s32 1, %v291
      %v293 = vrot.slane %v264, %v292
      %v296 = vmul.f32 %v268, %v289
      %v297 = vmul.f32 %v268, %v293
      %v298 = vmul.f32 %v273, %v289
      %v299 = vmul.f32 %v273, %v293
      %v300 = vmul.f32 %v278, %v289
      %v301 = vmul.f32 %v278, %v293
      %v302 = vmul.f32 %v283, %v289
      %v303 = vmul.f32 %v283, %v293
      %305 = vset.pattern.permute.xlu0 0
      %306 = vperm.xlu0 %305, %v256
      %v307 = vpop.permute.xlu0 %306
      %310 = vset.pattern.permute.xlu0 0
      %311 = vperm.xlu0 %310, %v257
      %v312 = vpop.permute.xlu0 %311
      %315 = vset.pattern.permute.xlu0 0
      %316 = vperm.xlu0 %315, %v258
      %v317 = vpop.permute.xlu0 %316
      %320 = vset.pattern.permute.xlu0 0
      %321 = vperm.xlu0 %320, %v259
      %v322 = vpop.permute.xlu0 %321
      %v324 = vadd.f32 %v307, %v296
      %v325 = vadd.f32 %v307, %v297
      %v326 = vadd.f32 %v312, %v298
      %v327 = vadd.f32 %v312, %v299
      %v328 = vadd.f32 %v317, %v300
      %v329 = vadd.f32 %v317, %v301
      %v330 = vadd.f32 %v322, %v302
      %v331 = vadd.f32 %v322, %v303
      %s332 = scalar_lea.vmem %s246, 1
      %v333 = vld [vmem:[%s332] ss:$4 sm:$0x3]
      %334 = vset.pattern.permute.xlu0 1
      %335 = vperm.xlu0 %334, %v260
      %v336 = vpop.permute.xlu0 %335
      %338 = vset.pattern.permute.xlu0 1
      %339 = vperm.xlu0 %338, %v261
      %v340 = vpop.permute.xlu0 %339
      %342 = vset.pattern.permute.xlu0 1
      %343 = vperm.xlu0 %342, %v262
      %v344 = vpop.permute.xlu0 %343
      %346 = vset.pattern.permute.xlu0 1
      %347 = vperm.xlu0 %346, %v263
      %v348 = vpop.permute.xlu0 %347
      %v351 = vlaneseq
      %v352 = vshrl.u32 %v351, 7
      %v353 = vsub.s32 0, %v352
      %v354 = vrot.slane %v333, %v353
      %v355 = vlaneseq
      %v356 = vshrl.u32 %v355, 7
      %v357 = vsub.s32 1, %v356
      %v358 = vrot.slane %v333, %v357
      %v361 = vmul.f32 %v336, %v354
      %v362 = vmul.f32 %v336, %v358
      %v363 = vmul.f32 %v340, %v354
      %v364 = vmul.f32 %v340, %v358
      %v365 = vmul.f32 %v344, %v354
      %v366 = vmul.f32 %v344, %v358
      %v367 = vmul.f32 %v348, %v354
      %v368 = vmul.f32 %v348, %v358
      %v369 = vadd.f32 %v324, %v361
      %v370 = vadd.f32 %v325, %v362
      %v371 = vadd.f32 %v326, %v363
      %v372 = vadd.f32 %v327, %v364
      %v373 = vadd.f32 %v328, %v365
      %v374 = vadd.f32 %v329, %v366
      %v375 = vadd.f32 %v330, %v367
      %v376 = vadd.f32 %v331, %v368
      %s377 = scalar_lea.vmem %s246, 2
      %v378 = vld [vmem:[%s377] ss:$4 sm:$0x3]
      %379 = vset.pattern.permute.xlu0 2
      %380 = vperm.xlu0 %379, %v260
      %v381 = vpop.permute.xlu0 %380
      %383 = vset.pattern.permute.xlu0 2
      %384 = vperm.xlu0 %383, %v261
      %v385 = vpop.permute.xlu0 %384
      %387 = vset.pattern.permute.xlu0 2
      %388 = vperm.xlu0 %387, %v262
      %v389 = vpop.permute.xlu0 %388
      %391 = vset.pattern.permute.xlu0 2
      %392 = vperm.xlu0 %391, %v263
      %v393 = vpop.permute.xlu0 %392
      %v396 = vlaneseq
      %v397 = vshrl.u32 %v396, 7
      %v398 = vsub.s32 0, %v397
      %v399 = vrot.slane %v378, %v398
      %v400 = vlaneseq
      %v401 = vshrl.u32 %v400, 7
      %v402 = vsub.s32 1, %v401
      %v403 = vrot.slane %v378, %v402
      %v406 = vmul.f32 %v381, %v399
      %v407 = vmul.f32 %v381, %v403
      %v408 = vmul.f32 %v385, %v399
      %v409 = vmul.f32 %v385, %v403
      %v410 = vmul.f32 %v389, %v399
      %v411 = vmul.f32 %v389, %v403
      %v412 = vmul.f32 %v393, %v399
      %v413 = vmul.f32 %v393, %v403
      %v414 = vadd.f32 %v369, %v406
      %v415 = vadd.f32 %v370, %v407
      %v416 = vadd.f32 %v371, %v408
      %v417 = vadd.f32 %v372, %v409
      %v418 = vadd.f32 %v373, %v410
      %v419 = vadd.f32 %v374, %v411
      %v420 = vadd.f32 %v375, %v412
      %v421 = vadd.f32 %v376, %v413
      %s422 = scalar_lea.vmem %s246, 3
      %v423 = vld [vmem:[%s422] ss:$4 sm:$0x3]
      %424 = vset.pattern.permute.xlu0 3
      %425 = vperm.xlu0 %424, %v260
      %v426 = vpop.permute.xlu0 %425
      %428 = vset.pattern.permute.xlu0 3
      %429 = vperm.xlu0 %428, %v261
      %v430 = vpop.permute.xlu0 %429
      %432 = vset.pattern.permute.xlu0 3
      %433 = vperm.xlu0 %432, %v262
      %v434 = vpop.permute.xlu0 %433
      %436 = vset.pattern.permute.xlu0 3
      %437 = vperm.xlu0 %436, %v263
      %v438 = vpop.permute.xlu0 %437
      %v441 = vlaneseq
      %v442 = vshrl.u32 %v441, 7
      %v443 = vsub.s32 0, %v442
      %v444 = vrot.slane %v423, %v443
      %v445 = vlaneseq
      %v446 = vshrl.u32 %v445, 7
      %v447 = vsub.s32 1, %v446
      %v448 = vrot.slane %v423, %v447
      %v451 = vmul.f32 %v426, %v444
      %v452 = vmul.f32 %v426, %v448
      %v453 = vmul.f32 %v430, %v444
      %v454 = vmul.f32 %v430, %v448
      %v455 = vmul.f32 %v434, %v444
      %v456 = vmul.f32 %v434, %v448
      %v457 = vmul.f32 %v438, %v444
      %v458 = vmul.f32 %v438, %v448
      %v459 = vadd.f32 %v414, %v451
      %v460 = vadd.f32 %v415, %v452
      %v461 = vadd.f32 %v416, %v453
      %v462 = vadd.f32 %v417, %v454
      %v463 = vadd.f32 %v418, %v455
      %v464 = vadd.f32 %v419, %v456
      %v465 = vadd.f32 %v420, %v457
      %v466 = vadd.f32 %v421, %v458
      %v467 = vmin.f32 %v459, 20.0
      %v468 = vmin.f32 %v460, 20.0
      %v469 = vmin.f32 %v461, 20.0
      %v470 = vmin.f32 %v462, 20.0
      %v471 = vmin.f32 %v463, 20.0
      %v472 = vmin.f32 %v464, 20.0
      %v473 = vmin.f32 %v465, 20.0
      %v474 = vmin.f32 %v466, 20.0
      %v475 = vmul.f32 %v467, 1.442695
      %v476 = vpow.pop %v475
      %v477 = vmul.f32 %v468, 1.442695
      %v478 = vpow.pop %v477
      %v479 = vmul.f32 %v469, 1.442695
      %v480 = vpow.pop %v479
      %v481 = vmul.f32 %v470, 1.442695
      %v482 = vpow.pop %v481
      %v483 = vmul.f32 %v471, 1.442695
      %v484 = vpow.pop %v483
      %v485 = vmul.f32 %v472, 1.442695
      %v486 = vpow.pop %v485
      %v487 = vmul.f32 %v473, 1.442695
      %v488 = vpow.pop %v487
      %v489 = vmul.f32 %v474, 1.442695
      %v490 = vpow.pop %v489
      %v491 = vadd.f32 %v476, 2.0
      %v492 = vadd.f32 %v478, 2.0
      %v493 = vadd.f32 %v480, 2.0
      %v494 = vadd.f32 %v482, 2.0
      %v495 = vadd.f32 %v484, 2.0
      %v496 = vadd.f32 %v486, 2.0
      %v497 = vadd.f32 %v488, 2.0
      %v498 = vadd.f32 %v490, 2.0
      %v499 = vmul.f32 %v476, %v491
      %v500 = vmul.f32 %v478, %v492
      %v501 = vmul.f32 %v480, %v493
      %v502 = vmul.f32 %v482, %v494
      %v503 = vmul.f32 %v484, %v495
      %v504 = vmul.f32 %v486, %v496
      %v505 = vmul.f32 %v488, %v497
      %v506 = vmul.f32 %v490, %v498
      %vm507 = vcmp.gt.f32.partialorder %v459, 20.0
      %vm508 = vcmp.gt.f32.partialorder %v460, 20.0
      %vm509 = vcmp.gt.f32.partialorder %v461, 20.0
      %vm510 = vcmp.gt.f32.partialorder %v462, 20.0
      %vm511 = vcmp.gt.f32.partialorder %v463, 20.0
      %vm512 = vcmp.gt.f32.partialorder %v464, 20.0
      %vm513 = vcmp.gt.f32.partialorder %v465, 20.0
      %vm514 = vcmp.gt.f32.partialorder %v466, 20.0
      %v515 = vadd.f32 %v499, 2.0
      %v516 = vadd.f32 %v500, 2.0
      %v517 = vadd.f32 %v501, 2.0
      %v518 = vadd.f32 %v502, 2.0
      %v519 = vadd.f32 %v503, 2.0
      %v520 = vadd.f32 %v504, 2.0
      %v521 = vadd.f32 %v505, 2.0
      %v522 = vadd.f32 %v506, 2.0
      %v523 = vrcp.pop %v515
      %v524 = vrcp.pop %v516
      %v525 = vrcp.pop %v517
      %v526 = vrcp.pop %v518
      %v527 = vrcp.pop %v519
      %v528 = vrcp.pop %v520
      %v529 = vrcp.pop %v521
      %v530 = vrcp.pop %v522
      %v531 = vmul.f32 %v499, %v523
      %v532 = vmul.f32 %v500, %v524
      %v533 = vmul.f32 %v501, %v525
      %v534 = vmul.f32 %v502, %v526
      %v535 = vmul.f32 %v503, %v527
      %v536 = vmul.f32 %v504, %v528
      %v537 = vmul.f32 %v505, %v529
      %v538 = vmul.f32 %v506, %v530
      %v539 = vmul.f32 %v459, %v531
      %v540 = vmul.f32 %v460, %v532
      %v541 = vmul.f32 %v461, %v533
      %v542 = vmul.f32 %v462, %v534
      %v543 = vmul.f32 %v463, %v535
      %v544 = vmul.f32 %v464, %v536
      %v545 = vmul.f32 %v465, %v537
      %v546 = vmul.f32 %v466, %v538
      %v547 = vsel %vm507, %v459, %v539
      %v548 = vsel %vm508, %v460, %v540
      %v549 = vsel %vm509, %v461, %v541
      %v550 = vsel %vm510, %v462, %v542
      %v551 = vsel %vm511, %v463, %v543
      %v552 = vsel %vm512, %v464, %v544
      %v553 = vsel %vm513, %v465, %v545
      %v554 = vsel %vm514, %v466, %v546
      %vm555 = vcmask 1048440
      %556 = vst.msk [vmem:[#allocation2] sm:$0xff] %vm555, 0.0
      %557 = vst.msk [vmem:[#allocation2 + $0x20] sm:$0xff] %vm555, 0.0
      %558 = vst.msk [vmem:[#allocation2 + $0x40] sm:$0xff] %vm555, 0.0
      %559 = vst.msk [vmem:[#allocation2 + $0x60] sm:$0xff] %vm555, 0.0
      %vm560 = vcmask 138240
      %561 = vst.msk [vmem:[#allocation2 + $0x18] sm:$0xff] %vm560, 0.0
      %562 = vst.msk [vmem:[#allocation2 + $0x38] sm:$0xff] %vm560, 0.0
      %563 = vst.msk [vmem:[#allocation2 + $0x58] sm:$0xff] %vm560, 0.0
      %564 = vst.msk [vmem:[#allocation2 + $0x78] sm:$0xff] %vm560, 0.0
      %565 = vst [vmem:[#allocation2 + $0x8] sm:$0xff] %v547
      %566 = vst [vmem:[#allocation2 + $0x10] sm:$0xff] %v548
      %567 = vst [vmem:[#allocation2 + $0x28] sm:$0xff] %v549
      %568 = vst [vmem:[#allocation2 + $0x30] sm:$0xff] %v550
      %569 = vst [vmem:[#allocation2 + $0x48] sm:$0xff] %v551
      %570 = vst [vmem:[#allocation2 + $0x50] sm:$0xff] %v552
      %571 = vst [vmem:[#allocation2 + $0x68] sm:$0xff] %v553
      %572 = vst [vmem:[#allocation2 + $0x70] sm:$0xff] %v554
      %v573 = vld [vmem:[#allocation2] sm:$0xff]
      %v574 = vld [vmem:[#allocation2 + $0x8] sm:$0xff]
      %v575 = vld [vmem:[#allocation2 + $0x10] sm:$0xff]
      %v576 = vld [vmem:[#allocation2 + $0x20] sm:$0xff]
      %v577 = vld [vmem:[#allocation2 + $0x28] sm:$0xff]
      %v578 = vld [vmem:[#allocation2 + $0x30] sm:$0xff]
      %v579 = vld [vmem:[#allocation2 + $0x40] sm:$0xff]
      %v580 = vld [vmem:[#allocation2 + $0x48] sm:$0xff]
      %v581 = vld [vmem:[#allocation2 + $0x50] sm:$0xff]
      %v582 = vld [vmem:[#allocation2 + $0x60] sm:$0xff]
      %v583 = vld [vmem:[#allocation2 + $0x68] sm:$0xff]
      %v584 = vld [vmem:[#allocation2 + $0x70] sm:$0xff]
      %v586 = vlaneseq
      %v587 = vshrl.u32 %v586, 7
      %v588 = vsub.s32 0, %v587
      %v589 = vrot.slane %v253, %v588
      %v590 = vlaneseq
      %v591 = vshrl.u32 %v590, 7
      %v592 = vsub.s32 1, %v591
      %v593 = vrot.slane %v253, %v592
      %594 = vrot.lane.b32.xlu0 %v589, 111
      %v595 = vpop.permute.xlu0 %594
      %596 = vrot.lane.b32.xlu0 %v593, 111
      %v597 = vpop.permute.xlu0 %596
      %vm598 = vcmask 908288
      %v599 = vsel %vm598, %v595, %v597
      %v603 = vmul.f32 %v573, %v595
      %v604 = vmul.f32 %v574, %v599
      %v605 = vmul.f32 %v575, %v597
      %v606 = vmul.f32 %v576, %v595
      %v607 = vmul.f32 %v577, %v599
      %v608 = vmul.f32 %v578, %v597
      %v609 = vmul.f32 %v579, %v595
      %v610 = vmul.f32 %v580, %v599
      %v611 = vmul.f32 %v581, %v597
      %v612 = vmul.f32 %v582, %v595
      %v613 = vmul.f32 %v583, %v599
      %v614 = vmul.f32 %v584, %v597
      %v615 = vpack.c.bf16 %v606, %v603
      %v616 = vpack.c.bf16 %v607, %v604
      %v617 = vpack.c.bf16 %v608, %v605
      %v618 = vpack.c.bf16 %v612, %v609
      %v619 = vpack.c.bf16 %v613, %v610
      %v620 = vpack.c.bf16 %v614, %v611
      %627 = vrot.lane.b32.xlu0 %v615, 17
      %v628 = vpop.permute.xlu0 %627
      %629 = vrot.lane.b32.xlu0 %v616, 17
      %v630 = vpop.permute.xlu0 %629
      %631 = vrot.lane.b32.xlu0 %v617, 17
      %v632 = vpop.permute.xlu0 %631
      %633 = vrot.lane.b32.xlu0 %v618, 17
      %v634 = vpop.permute.xlu0 %633
      %635 = vrot.lane.b32.xlu0 %v619, 17
      %v636 = vpop.permute.xlu0 %635
      %637 = vrot.lane.b32.xlu0 %v620, 17
      %v638 = vpop.permute.xlu0 %637
      %vm639 = vcmask 138240
      %v640 = vsel %vm639, %v628, %v630
      %v641 = vsel %vm639, %v630, %v632
      %v642 = vsel %vm639, %v634, %v636
      %v643 = vsel %vm639, %v636, %v638
      %648 = vst [vmem:[#allocation3] sm:$0xff] %v640
      %649 = vst [vmem:[#allocation3 + $0x8] sm:$0xff] %v641
      %650 = vst [vmem:[#allocation3 + $0x10] sm:$0xff] %v642
      %651 = vst [vmem:[#allocation3 + $0x18] sm:$0xff] %v643
      %v652 = vld [vmem:[#allocation2] sm:$0xff]
      %v653 = vld [vmem:[#allocation2 + $0x8] sm:$0xff]
      %v654 = vld [vmem:[#allocation2 + $0x10] sm:$0xff]
      %v655 = vld [vmem:[#allocation2 + $0x20] sm:$0xff]
      %v656 = vld [vmem:[#allocation2 + $0x28] sm:$0xff]
      %v657 = vld [vmem:[#allocation2 + $0x30] sm:$0xff]
      %v658 = vld [vmem:[#allocation2 + $0x40] sm:$0xff]
      %v659 = vld [vmem:[#allocation2 + $0x48] sm:$0xff]
      %v660 = vld [vmem:[#allocation2 + $0x50] sm:$0xff]
      %v661 = vld [vmem:[#allocation2 + $0x60] sm:$0xff]
      %v662 = vld [vmem:[#allocation2 + $0x68] sm:$0xff]
      %v663 = vld [vmem:[#allocation2 + $0x70] sm:$0xff]
      %v664 = vpack.c.bf16 %v655, %v652
      %v665 = vpack.c.bf16 %v656, %v653
      %v666 = vpack.c.bf16 %v657, %v654
      %v667 = vpack.c.bf16 %v661, %v658
      %v668 = vpack.c.bf16 %v662, %v659
      %v669 = vpack.c.bf16 %v663, %v660
      %676 = vrot.lane.b32.xlu0 %v664, 16
      %v677 = vpop.permute.xlu0 %676
      %678 = vrot.lane.b32.xlu0 %v665, 16
      %v679 = vpop.permute.xlu0 %678
      %680 = vrot.lane.b32.xlu0 %v666, 16
      %v681 = vpop.permute.xlu0 %680
      %682 = vrot.lane.b32.xlu0 %v667, 16
      %v683 = vpop.permute.xlu0 %682
      %684 = vrot.lane.b32.xlu0 %v668, 16
      %v685 = vpop.permute.xlu0 %684
      %686 = vrot.lane.b32.xlu0 %v669, 16
      %v687 = vpop.permute.xlu0 %686
      %vm688 = vcmask 130048
      %v689 = vsel %vm688, %v677, %v679
      %v690 = vsel %vm688, %v679, %v681
      %v691 = vsel %vm688, %v683, %v685
      %v692 = vsel %vm688, %v685, %v687
      %697 = vst [vmem:[#allocation3 + $0x20] sm:$0xff] %v689
      %698 = vst [vmem:[#allocation3 + $0x28] sm:$0xff] %v690
      %699 = vst [vmem:[#allocation3 + $0x30] sm:$0xff] %v691
      %700 = vst [vmem:[#allocation3 + $0x38] sm:$0xff] %v692
      %v701 = vld [vmem:[#allocation2] sm:$0xff]
      %v702 = vld [vmem:[#allocation2 + $0x8] sm:$0xff]
      %v703 = vld [vmem:[#allocation2 + $0x10] sm:$0xff]
      %v704 = vld [vmem:[#allocation2 + $0x20] sm:$0xff]
      %v705 = vld [vmem:[#allocation2 + $0x28] sm:$0xff]
      %v706 = vld [vmem:[#allocation2 + $0x30] sm:$0xff]
      %v707 = vld [vmem:[#allocation2 + $0x40] sm:$0xff]
      %v708 = vld [vmem:[#allocation2 + $0x48] sm:$0xff]
      %v709 = vld [vmem:[#allocation2 + $0x50] sm:$0xff]
      %v710 = vld [vmem:[#allocation2 + $0x60] sm:$0xff]
      %v711 = vld [vmem:[#allocation2 + $0x68] sm:$0xff]
      %v712 = vld [vmem:[#allocation2 + $0x70] sm:$0xff]
      %v714 = vlaneseq
      %v715 = vshrl.u32 %v714, 7
      %v716 = vsub.s32 0, %v715
      %v717 = vrot.slane %v255, %v716
      %v718 = vlaneseq
      %v719 = vshrl.u32 %v718, 7
      %v720 = vsub.s32 1, %v719
      %v721 = vrot.slane %v255, %v720
      %722 = vrot.lane.b32.xlu0 %v717, 113
      %v723 = vpop.permute.xlu0 %722
      %724 = vrot.lane.b32.xlu0 %v721, 113
      %v725 = vpop.permute.xlu0 %724
      %vm726 = vcmask 924672
      %v727 = vsel %vm726, %v723, %v725
      %v731 = vmul.f32 %v701, %v723
      %v732 = vmul.f32 %v702, %v727
      %v733 = vmul.f32 %v703, %v725
      %v734 = vmul.f32 %v704, %v723
      %v735 = vmul.f32 %v705, %v727
      %v736 = vmul.f32 %v706, %v725
      %v737 = vmul.f32 %v707, %v723
      %v738 = vmul.f32 %v708, %v727
      %v739 = vmul.f32 %v709, %v725
      %v740 = vmul.f32 %v710, %v723
      %v741 = vmul.f32 %v711, %v727
      %v742 = vmul.f32 %v712, %v725
      %v743 = vpack.c.bf16 %v734, %v731
      %v744 = vpack.c.bf16 %v735, %v732
      %v745 = vpack.c.bf16 %v736, %v733
      %v746 = vpack.c.bf16 %v740, %v737
      %v747 = vpack.c.bf16 %v741, %v738
      %v748 = vpack.c.bf16 %v742, %v739
      %755 = vrot.lane.b32.xlu0 %v743, 15
      %v756 = vpop.permute.xlu0 %755
      %757 = vrot.lane.b32.xlu0 %v744, 15
      %v758 = vpop.permute.xlu0 %757
      %759 = vrot.lane.b32.xlu0 %v745, 15
      %v760 = vpop.permute.xlu0 %759
      %761 = vrot.lane.b32.xlu0 %v746, 15
      %v762 = vpop.permute.xlu0 %761
      %763 = vrot.lane.b32.xlu0 %v747, 15
      %v764 = vpop.permute.xlu0 %763
      %765 = vrot.lane.b32.xlu0 %v748, 15
      %v766 = vpop.permute.xlu0 %765
      %vm767 = vcmask 121856
      %v768 = vsel %vm767, %v756, %v758
      %v769 = vsel %vm767, %v758, %v760
      %v770 = vsel %vm767, %v762, %v764
      %v771 = vsel %vm767, %v764, %v766
      %776 = vst [vmem:[#allocation3 + $0x40] sm:$0xff] %v768
      %777 = vst [vmem:[#allocation3 + $0x48] sm:$0xff] %v769
      %778 = vst [vmem:[#allocation3 + $0x50] sm:$0xff] %v770
      %779 = vst [vmem:[#allocation3 + $0x58] sm:$0xff] %v771
      %v780 = vld [vmem:[#allocation2] sm:$0xff]
      %v781 = vld [vmem:[#allocation2 + $0x8] sm:$0xff]
      %v782 = vld [vmem:[#allocation2 + $0x10] sm:$0xff]
      %v783 = vld [vmem:[#allocation2 + $0x20] sm:$0xff]
      %v784 = vld [vmem:[#allocation2 + $0x28] sm:$0xff]
      %v785 = vld [vmem:[#allocation2 + $0x30] sm:$0xff]
      %v786 = vld [vmem:[#allocation2 + $0x40] sm:$0xff]
      %v787 = vld [vmem:[#allocation2 + $0x48] sm:$0xff]
      %v788 = vld [vmem:[#allocation2 + $0x50] sm:$0xff]
      %v789 = vld [vmem:[#allocation2 + $0x60] sm:$0xff]
      %v790 = vld [vmem:[#allocation2 + $0x68] sm:$0xff]
      %v791 = vld [vmem:[#allocation2 + $0x70] sm:$0xff]
      %792 = vrot.lane.b32.xlu0 %v589, 127
      %v793 = vpop.permute.xlu0 %792
      %794 = vrot.lane.b32.xlu0 %v593, 127
      %v795 = vpop.permute.xlu0 %794
      %vm796 = vcmask 1039360
      %v797 = vsel %vm796, %v793, %v795
      %v801 = vmul.f32 %v780, %v793
      %v802 = vmul.f32 %v781, %v797
      %v803 = vmul.f32 %v782, %v795
      %v804 = vmul.f32 %v783, %v793
      %v805 = vmul.f32 %v784, %v797
      %v806 = vmul.f32 %v785, %v795
      %v807 = vmul.f32 %v786, %v793
      %v808 = vmul.f32 %v787, %v797
      %v809 = vmul.f32 %v788, %v795
      %v810 = vmul.f32 %v789, %v793
      %v811 = vmul.f32 %v790, %v797
      %v812 = vmul.f32 %v791, %v795
      %v813 = vpack.c.bf16 %v804, %v801
      %v814 = vpack.c.bf16 %v805, %v802
      %v815 = vpack.c.bf16 %v806, %v803
      %v816 = vpack.c.bf16 %v810, %v807
      %v817 = vpack.c.bf16 %v811, %v808
      %v818 = vpack.c.bf16 %v812, %v809
      %825 = vrot.lane.b32.xlu0 %v813, 1
      %v826 = vpop.permute.xlu0 %825
      %827 = vrot.lane.b32.xlu0 %v814, 1
      %v828 = vpop.permute.xlu0 %827
      %829 = vrot.lane.b32.xlu0 %v815, 1
      %v830 = vpop.permute.xlu0 %829
      %831 = vrot.lane.b32.xlu0 %v816, 1
      %v832 = vpop.permute.xlu0 %831
      %833 = vrot.lane.b32.xlu0 %v817, 1
      %v834 = vpop.permute.xlu0 %833
      %835 = vrot.lane.b32.xlu0 %v818, 1
      %v836 = vpop.permute.xlu0 %835
      %vm837 = vcmask 7168
      %v838 = vsel %vm837, %v826, %v828
      %v839 = vsel %vm837, %v828, %v830
      %v840 = vsel %vm837, %v832, %v834
      %v841 = vsel %vm837, %v834, %v836
      %846 = vst [vmem:[#allocation3 + $0x60] sm:$0xff] %v838
      %847 = vst [vmem:[#allocation3 + $0x68] sm:$0xff] %v839
      %848 = vst [vmem:[#allocation3 + $0x70] sm:$0xff] %v840
      %849 = vst [vmem:[#allocation3 + $0x78] sm:$0xff] %v841
      %v850 = vld [vmem:[#allocation2 + $0x8] sm:$0xff]
      %v851 = vld [vmem:[#allocation2 + $0x10] sm:$0xff]
      %v852 = vld [vmem:[#allocation2 + $0x28] sm:$0xff]
      %v853 = vld [vmem:[#allocation2 + $0x30] sm:$0xff]
      %v854 = vld [vmem:[#allocation2 + $0x48] sm:$0xff]
      %v855 = vld [vmem:[#allocation2 + $0x50] sm:$0xff]
      %v856 = vld [vmem:[#allocation2 + $0x68] sm:$0xff]
      %v857 = vld [vmem:[#allocation2 + $0x70] sm:$0xff]
      %v858 = vpack.c.bf16 %v852, %v850
      %v859 = vpack.c.bf16 %v853, %v851
      %v860 = vpack.c.bf16 %v856, %v854
      %v861 = vpack.c.bf16 %v857, %v855
      %862 = vst [vmem:[#allocation3 + $0x80] sm:$0xff] %v858
      %863 = vst [vmem:[#allocation3 + $0x88] sm:$0xff] %v859
      %864 = vst [vmem:[#allocation3 + $0x90] sm:$0xff] %v860
      %865 = vst [vmem:[#allocation3 + $0x98] sm:$0xff] %v861
      %v866 = vld [vmem:[#allocation2 + $0x8] sm:$0xff]
      %v867 = vld [vmem:[#allocation2 + $0x10] sm:$0xff]
      %v868 = vld [vmem:[#allocation2 + $0x18] sm:$0xff]
      %v869 = vld [vmem:[#allocation2 + $0x28] sm:$0xff]
      %v870 = vld [vmem:[#allocation2 + $0x30] sm:$0xff]
      %v871 = vld [vmem:[#allocation2 + $0x38] sm:$0xff]
      %v872 = vld [vmem:[#allocation2 + $0x48] sm:$0xff]
      %v873 = vld [vmem:[#allocation2 + $0x50] sm:$0xff]
      %v874 = vld [vmem:[#allocation2 + $0x58] sm:$0xff]
      %v875 = vld [vmem:[#allocation2 + $0x68] sm:$0xff]
      %v876 = vld [vmem:[#allocation2 + $0x70] sm:$0xff]
      %v877 = vld [vmem:[#allocation2 + $0x78] sm:$0xff]
      %878 = vrot.lane.b32.xlu0 %v717, 1
      %v879 = vpop.permute.xlu0 %878
      %880 = vrot.lane.b32.xlu0 %v721, 1
      %v881 = vpop.permute.xlu0 %880
      %vm882 = vcmask 7168
      %v883 = vsel %vm882, %v879, %v881
      %v887 = vmul.f32 %v866, %v879
      %v888 = vmul.f32 %v867, %v883
      %v889 = vmul.f32 %v868, %v881
      %v890 = vmul.f32 %v869, %v879
      %v891 = vmul.f32 %v870, %v883
      %v892 = vmul.f32 %v871, %v881
      %v893 = vmul.f32 %v872, %v879
      %v894 = vmul.f32 %v873, %v883
      %v895 = vmul.f32 %v874, %v881
      %v896 = vmul.f32 %v875, %v879
      %v897 = vmul.f32 %v876, %v883
      %v898 = vmul.f32 %v877, %v881
      %v899 = vpack.c.bf16 %v890, %v887
      %v900 = vpack.c.bf16 %v891, %v888
      %v901 = vpack.c.bf16 %v892, %v889
      %v902 = vpack.c.bf16 %v896, %v893
      %v903 = vpack.c.bf16 %v897, %v894
      %v904 = vpack.c.bf16 %v898, %v895
      %911 = vrot.lane.b32.xlu0 %v899, 127
      %v912 = vpop.permute.xlu0 %911
      %913 = vrot.lane.b32.xlu0 %v900, 127
      %v914 = vpop.permute.xlu0 %913
      %915 = vrot.lane.b32.xlu0 %v901, 127
      %v916 = vpop.permute.xlu0 %915
      %917 = vrot.lane.b32.xlu0 %v902, 127
      %v918 = vpop.permute.xlu0 %917
      %919 = vrot.lane.b32.xlu0 %v903, 127
      %v920 = vpop.permute.xlu0 %919
      %921 = vrot.lane.b32.xlu0 %v904, 127
      %v922 = vpop.permute.xlu0 %921
      %vm923 = vcmask 1039360
      %v924 = vsel %vm923, %v912, %v914
      %v925 = vsel %vm923, %v914, %v916
      %v926 = vsel %vm923, %v918, %v920
      %v927 = vsel %vm923, %v920, %v922
      %932 = vst [vmem:[#allocation3 + $0xa0] sm:$0xff] %v924
      %933 = vst [vmem:[#allocation3 + $0xa8] sm:$0xff] %v925
      %934 = vst [vmem:[#allocation3 + $0xb0] sm:$0xff] %v926
      %935 = vst [vmem:[#allocation3 + $0xb8] sm:$0xff] %v927
      %v936 = vld [vmem:[#allocation2 + $0x8] sm:$0xff]
      %v937 = vld [vmem:[#allocation2 + $0x10] sm:$0xff]
      %v938 = vld [vmem:[#allocation2 + $0x18] sm:$0xff]
      %v939 = vld [vmem:[#allocation2 + $0x28] sm:$0xff]
      %v940 = vld [vmem:[#allocation2 + $0x30] sm:$0xff]
      %v941 = vld [vmem:[#allocation2 + $0x38] sm:$0xff]
      %v942 = vld [vmem:[#allocation2 + $0x48] sm:$0xff]
      %v943 = vld [vmem:[#allocation2 + $0x50] sm:$0xff]
      %v944 = vld [vmem:[#allocation2 + $0x58] sm:$0xff]
      %v945 = vld [vmem:[#allocation2 + $0x68] sm:$0xff]
      %v946 = vld [vmem:[#allocation2 + $0x70] sm:$0xff]
      %v947 = vld [vmem:[#allocation2 + $0x78] sm:$0xff]
      %948 = vrot.lane.b32.xlu0 %v589, 15
      %v949 = vpop.permute.xlu0 %948
      %950 = vrot.lane.b32.xlu0 %v593, 15
      %v951 = vpop.permute.xlu0 %950
      %vm952 = vcmask 121856
      %v953 = vsel %vm952, %v949, %v951
      %v957 = vmul.f32 %v936, %v949
      %v958 = vmul.f32 %v937, %v953
      %v959 = vmul.f32 %v938, %v951
      %v960 = vmul.f32 %v939, %v949
      %v961 = vmul.f32 %v940, %v953
      %v962 = vmul.f32 %v941, %v951
      %v963 = vmul.f32 %v942, %v949
      %v964 = vmul.f32 %v943, %v953
      %v965 = vmul.f32 %v944, %v951
      %v966 = vmul.f32 %v945, %v949
      %v967 = vmul.f32 %v946, %v953
      %v968 = vmul.f32 %v947, %v951
      %v969 = vpack.c.bf16 %v960, %v957
      %v970 = vpack.c.bf16 %v961, %v958
      %v971 = vpack.c.bf16 %v962, %v959
      %v972 = vpack.c.bf16 %v966, %v963
      %v973 = vpack.c.bf16 %v967, %v964
      %v974 = vpack.c.bf16 %v968, %v965
      %981 = vrot.lane.b32.xlu0 %v969, 113
      %v982 = vpop.permute.xlu0 %981
      %983 = vrot.lane.b32.xlu0 %v970, 113
      %v984 = vpop.permute.xlu0 %983
      %985 = vrot.lane.b32.xlu0 %v971, 113
      %v986 = vpop.permute.xlu0 %985
      %987 = vrot.lane.b32.xlu0 %v972, 113
      %v988 = vpop.permute.xlu0 %987
      %989 = vrot.lane.b32.xlu0 %v973, 113
      %v990 = vpop.permute.xlu0 %989
      %991 = vrot.lane.b32.xlu0 %v974, 113
      %v992 = vpop.permute.xlu0 %991
      %vm993 = vcmask 924672
      %v994 = vsel %vm993, %v982, %v984
      %v995 = vsel %vm993, %v984, %v986
      %v996 = vsel %vm993, %v988, %v990
      %v997 = vsel %vm993, %v990, %v992
      %1002 = vst [vmem:[#allocation3 + $0xc0] sm:$0xff] %v994
      %1003 = vst [vmem:[#allocation3 + $0xc8] sm:$0xff] %v995
      %1004 = vst [vmem:[#allocation3 + $0xd0] sm:$0xff] %v996
      %1005 = vst [vmem:[#allocation3 + $0xd8] sm:$0xff] %v997
      %v1006 = vld [vmem:[#allocation2 + $0x8] sm:$0xff]
      %v1007 = vld [vmem:[#allocation2 + $0x10] sm:$0xff]
      %v1008 = vld [vmem:[#allocation2 + $0x18] sm:$0xff]
      %v1009 = vld [vmem:[#allocation2 + $0x28] sm:$0xff]
      %v1010 = vld [vmem:[#allocation2 + $0x30] sm:$0xff]
      %v1011 = vld [vmem:[#allocation2 + $0x38] sm:$0xff]
      %v1012 = vld [vmem:[#allocation2 + $0x48] sm:$0xff]
      %v1013 = vld [vmem:[#allocation2 + $0x50] sm:$0xff]
      %v1014 = vld [vmem:[#allocation2 + $0x58] sm:$0xff]
      %v1015 = vld [vmem:[#allocation2 + $0x68] sm:$0xff]
      %v1016 = vld [vmem:[#allocation2 + $0x70] sm:$0xff]
      %v1017 = vld [vmem:[#allocation2 + $0x78] sm:$0xff]
      %v1018 = vpack.c.bf16 %v1009, %v1006
      %v1019 = vpack.c.bf16 %v1010, %v1007
      %v1020 = vpack.c.bf16 %v1011, %v1008
      %v1021 = vpack.c.bf16 %v1015, %v1012
      %v1022 = vpack.c.bf16 %v1016, %v1013
      %v1023 = vpack.c.bf16 %v1017, %v1014
      %1030 = vrot.lane.b32.xlu0 %v1018, 112
      %v1031 = vpop.permute.xlu0 %1030
      %1032 = vrot.lane.b32.xlu0 %v1019, 112
      %v1033 = vpop.permute.xlu0 %1032
      %1034 = vrot.lane.b32.xlu0 %v1020, 112
      %v1035 = vpop.permute.xlu0 %1034
      %1036 = vrot.lane.b32.xlu0 %v1021, 112
      %v1037 = vpop.permute.xlu0 %1036
      %1038 = vrot.lane.b32.xlu0 %v1022, 112
      %v1039 = vpop.permute.xlu0 %1038
      %1040 = vrot.lane.b32.xlu0 %v1023, 112
      %v1041 = vpop.permute.xlu0 %1040
      %vm1042 = vcmask 916480
      %v1043 = vsel %vm1042, %v1031, %v1033
      %v1044 = vsel %vm1042, %v1033, %v1035
      %v1045 = vsel %vm1042, %v1037, %v1039
      %v1046 = vsel %vm1042, %v1039, %v1041
      %1051 = vst [vmem:[#allocation3 + $0xe0] sm:$0xff] %v1043
      %1052 = vst [vmem:[#allocation3 + $0xe8] sm:$0xff] %v1044
      %1053 = vst [vmem:[#allocation3 + $0xf0] sm:$0xff] %v1045
      %1054 = vst [vmem:[#allocation3 + $0xf8] sm:$0xff] %v1046
      %v1055 = vld [vmem:[#allocation2 + $0x8] sm:$0xff]
      %v1056 = vld [vmem:[#allocation2 + $0x10] sm:$0xff]
      %v1057 = vld [vmem:[#allocation2 + $0x18] sm:$0xff]
      %v1058 = vld [vmem:[#allocation2 + $0x28] sm:$0xff]
      %v1059 = vld [vmem:[#allocation2 + $0x30] sm:$0xff]
      %v1060 = vld [vmem:[#allocation2 + $0x38] sm:$0xff]
      %v1061 = vld [vmem:[#allocation2 + $0x48] sm:$0xff]
      %v1062 = vld [vmem:[#allocation2 + $0x50] sm:$0xff]
      %v1063 = vld [vmem:[#allocation2 + $0x58] sm:$0xff]
      %v1064 = vld [vmem:[#allocation2 + $0x68] sm:$0xff]
      %v1065 = vld [vmem:[#allocation2 + $0x70] sm:$0xff]
      %v1066 = vld [vmem:[#allocation2 + $0x78] sm:$0xff]
      %1067 = vrot.lane.b32.xlu0 %v717, 17
      %v1068 = vpop.permute.xlu0 %1067
      %1069 = vrot.lane.b32.xlu0 %v721, 17
      %v1070 = vpop.permute.xlu0 %1069
      %v1071 = vsel %vm560, %v1068, %v1070
      %v1075 = vmul.f32 %v1055, %v1068
      %v1076 = vmul.f32 %v1056, %v1071
      %v1077 = vmul.f32 %v1057, %v1070
      %v1078 = vmul.f32 %v1058, %v1068
      %v1079 = vmul.f32 %v1059, %v1071
      %v1080 = vmul.f32 %v1060, %v1070
      %v1081 = vmul.f32 %v1061, %v1068
      %v1082 = vmul.f32 %v1062, %v1071
      %v1083 = vmul.f32 %v1063, %v1070
      %v1084 = vmul.f32 %v1064, %v1068
      %v1085 = vmul.f32 %v1065, %v1071
      %v1086 = vmul.f32 %v1066, %v1070
      %v1087 = vpack.c.bf16 %v1078, %v1075
      %v1088 = vpack.c.bf16 %v1079, %v1076
      %v1089 = vpack.c.bf16 %v1080, %v1077
      %v1090 = vpack.c.bf16 %v1084, %v1081
      %v1091 = vpack.c.bf16 %v1085, %v1082
      %v1092 = vpack.c.bf16 %v1086, %v1083
      %1099 = vrot.lane.b32.xlu0 %v1087, 111
      %v1100 = vpop.permute.xlu0 %1099
      %1101 = vrot.lane.b32.xlu0 %v1088, 111
      %v1102 = vpop.permute.xlu0 %1101
      %1103 = vrot.lane.b32.xlu0 %v1089, 111
      %v1104 = vpop.permute.xlu0 %1103
      %1105 = vrot.lane.b32.xlu0 %v1090, 111
      %v1106 = vpop.permute.xlu0 %1105
      %1107 = vrot.lane.b32.xlu0 %v1091, 111
      %v1108 = vpop.permute.xlu0 %1107
      %1109 = vrot.lane.b32.xlu0 %v1092, 111
      %v1110 = vpop.permute.xlu0 %1109
      %vm1111 = vcmask 908288
      %v1112 = vsel %vm1111, %v1100, %v1102
      %v1113 = vsel %vm1111, %v1102, %v1104
      %v1114 = vsel %vm1111, %v1106, %v1108
      %v1115 = vsel %vm1111, %v1108, %v1110
      %1120 = vst [vmem:[#allocation3 + $0x100] sm:$0xff] %v1112
      %1121 = vst [vmem:[#allocation3 + $0x108] sm:$0xff] %v1113
      %1122 = vst [vmem:[#allocation3 + $0x110] sm:$0xff] %v1114
      %1123 = vst [vmem:[#allocation3 + $0x118] sm:$0xff] %v1115
      %v1124 = vld [vmem:[%s3] sm:$0xff]
      %v1125 = vld [vmem:[%s3 + $0x8] sm:$0xf]
      %v1126 = vld [vmem:[%s3 + $0xc] sm:$0xff]
      %v1127 = vld [vmem:[%s3 + $0x14] sm:$0xf]
      %v1128 = vld [vmem:[%s3 + $0x18] sm:$0xff]
      %v1129 = vld [vmem:[%s3 + $0x20] sm:$0xf]
      %v1130 = vld [vmem:[%s3 + $0x24] sm:$0xff]
      %v1131 = vld [vmem:[%s3 + $0x2c] sm:$0xf]
      %v1132 = vld [vmem:[#allocation3] sm:$0xff]
      %v1133 = vld [vmem:[#allocation3 + $0x8] sm:$0xff]
      %v1134 = vld [vmem:[#allocation3 + $0x10] sm:$0xff]
      %v1135 = vld [vmem:[#allocation3 + $0x18] sm:$0xff]
      %v1136 = vld [vmem:[#allocation3 + $0x20] sm:$0xff]
      %v1137 = vld [vmem:[#allocation3 + $0x28] sm:$0xff]
      %v1138 = vld [vmem:[#allocation3 + $0x30] sm:$0xff]
      %v1139 = vld [vmem:[#allocation3 + $0x38] sm:$0xff]
      %v1140 = vld [vmem:[#allocation3 + $0x40] sm:$0xff]
      %v1141 = vld [vmem:[#allocation3 + $0x48] sm:$0xff]
      %v1142 = vld [vmem:[#allocation3 + $0x50] sm:$0xff]
      %v1143 = vld [vmem:[#allocation3 + $0x58] sm:$0xff]
      %v1144 = vld [vmem:[#allocation3 + $0x60] sm:$0xff]
      %v1145 = vld [vmem:[#allocation3 + $0x68] sm:$0xff]
      %v1146 = vld [vmem:[#allocation3 + $0x70] sm:$0xff]
      %v1147 = vld [vmem:[#allocation3 + $0x78] sm:$0xff]
      %v1148 = vld [vmem:[#allocation3 + $0x80] sm:$0xff]
      %v1149 = vld [vmem:[#allocation3 + $0x88] sm:$0xff]
      %v1150 = vld [vmem:[#allocation3 + $0x90] sm:$0xff]
      %v1151 = vld [vmem:[#allocation3 + $0x98] sm:$0xff]
      %v1152 = vld [vmem:[#allocation3 + $0xa0] sm:$0xff]
      %v1153 = vld [vmem:[#allocation3 + $0xa8] sm:$0xff]
      %v1154 = vld [vmem:[#allocation3 + $0xb0] sm:$0xff]
      %v1155 = vld [vmem:[#allocation3 + $0xb8] sm:$0xff]
      %v1156 = vld [vmem:[#allocation3 + $0xc0] sm:$0xff]
      %v1157 = vld [vmem:[#allocation3 + $0xc8] sm:$0xff]
      %v1158 = vld [vmem:[#allocation3 + $0xd0] sm:$0xff]
      %v1159 = vld [vmem:[#allocation3 + $0xd8] sm:$0xff]
      %v1160 = vld [vmem:[#allocation3 + $0xe0] sm:$0xff]
      %v1161 = vld [vmem:[#allocation3 + $0xe8] sm:$0xff]
      %v1162 = vld [vmem:[#allocation3 + $0xf0] sm:$0xff]
      %v1163 = vld [vmem:[#allocation3 + $0xf8] sm:$0xff]
      %v1164 = vld [vmem:[#allocation3 + $0x100] sm:$0xff]
      %v1165 = vld [vmem:[#allocation3 + $0x108] sm:$0xff]
      %v1166 = vld [vmem:[#allocation3 + $0x110] sm:$0xff]
      %v1167 = vld [vmem:[#allocation3 + $0x118] sm:$0xff]
      %v1168 = vld [vmem:[%s4] sm:$0xff]
      %v1169 = vld [vmem:[%s4 + $0x8] sm:$0xff]
      %v1170 = vld [vmem:[%s4 + $0x10] sm:$0xff]
      %v1171 = vld [vmem:[%s4 + $0x18] sm:$0xff]
      %1173 = vset.pattern.permute.xlu0 0
      %1174 = vperm.xlu0 %1173, %v1168
      %v1175 = vpop.permute.xlu0 %1174
      %1178 = vset.pattern.permute.xlu0 0
      %1179 = vperm.xlu0 %1178, %v1169
      %v1180 = vpop.permute.xlu0 %1179
      %1183 = vset.pattern.permute.xlu0 0
      %1184 = vperm.xlu0 %1183, %v1170
      %v1185 = vpop.permute.xlu0 %1184
      %1188 = vset.pattern.permute.xlu0 0
      %1189 = vperm.xlu0 %1188, %v1171
      %v1190 = vpop.permute.xlu0 %1189
      %v1200 = vunpack.c.l.b16 %v1124
      %v1201 = vunpack.c.h.b16 %v1124
      %v1202 = vunpack.c.l.b16 %v1125
      %v1203 = vunpack.c.l.b16 %v1126
      %v1204 = vunpack.c.h.b16 %v1126
      %v1205 = vunpack.c.l.b16 %v1127
      %v1206 = vunpack.c.l.b16 %v1128
      %v1207 = vunpack.c.h.b16 %v1128
      %v1208 = vunpack.c.l.b16 %v1129
      %v1209 = vunpack.c.l.b16 %v1130
      %v1210 = vunpack.c.h.b16 %v1130
      %v1211 = vunpack.c.l.b16 %v1131
      %v1212 = vpack.c.b16 %v1203, %v1200
      %v1213 = vpack.c.b16 %v1204, %v1201
      %v1214 = vpack.c.b16 %v1205, %v1202
      %v1215 = vpack.c.b16 %v1209, %v1206
      %v1216 = vpack.c.b16 %v1210, %v1207
      %v1217 = vpack.c.b16 %v1211, %v1208
      %vm1222 = vcmask 261120
      %v1224 = vsel %vm1222, %v1214, 0
      %v1227 = vsel %vm1222, %v1217, 0
      %1229 = vmatprep.subr.bf16.mxu0 %v1133
      %1230 = vmatpush1.bf16.msra.mxu0 %v1132
      %1231 = vmatprep.subr.bf16.mxu0 %v1135
      %1232 = vmatpush1.bf16.msra.mxu0 %v1134
      %1233 = vmatprep.subr.bf16.mxu0 %v1137
      %1234 = vmatpush1.bf16.msra.mxu0 %v1136
      %1235 = vmatprep.subr.bf16.mxu0 %v1139
      %1236 = vmatpush1.bf16.msra.mxu0 %v1138
      %1237 = vmatprep.subr.bf16.mxu0 %v1141
      %1238 = vmatpush1.bf16.msra.mxu0 %v1140
      %1239 = vmatprep.subr.bf16.mxu0 %v1143
      %1240 = vmatpush1.bf16.msra.mxu0 %v1142
      %1241 = vmatprep.subr.bf16.mxu0 %v1145
      %1242 = vmatpush1.bf16.msra.mxu0 %v1144
      %1243 = vmatprep.subr.bf16.mxu0 %v1147
      %1244 = vmatpush1.bf16.msra.mxu0 %v1146
      %1245 = vmatprep.subr.bf16.mxu0 %v1149
      %1246 = vmatpush1.bf16.msra.mxu0 %v1148
      %1247 = vmatprep.subr.bf16.mxu0 %v1151
      %1248 = vmatpush1.bf16.msra.mxu0 %v1150
      %1249 = vmatprep.subr.bf16.mxu0 %v1153
      %1250 = vmatpush1.bf16.msra.mxu0 %v1152
      %1251 = vmatprep.subr.bf16.mxu0 %v1155
      %1252 = vmatpush1.bf16.msra.mxu0 %v1154
      %1253 = vmatprep.subr.bf16.mxu0 %v1157
      %1254 = vmatpush1.bf16.msra.mxu0 %v1156
      %1255 = vmatprep.subr.bf16.mxu0 %v1159
      %1256 = vmatpush1.bf16.msra.mxu0 %v1158
      %1257 = vmatprep.subr.bf16.mxu0 %v1161
      %1258 = vmatpush1.bf16.msra.mxu0 %v1160
      %1259 = vmatprep.subr.bf16.mxu0 %v1163
      %1260 = vmatpush1.bf16.msra.mxu0 %v1162
      %1261 = vmatprep.mubr.bf16.mxu0 %v1213
      %1262 = vmatmul.mubr.bf16.gmra.mrb[0].mxu0 %v1212
      %v1263 = vpop.f32.mrb[0].mxu0
      %v1264 = vadd.f32 %v1175, %v1263
      %v1265 = vpop.f32.mrb[0].mxu0
      %v1266 = vadd.f32 %v1175, %v1265
      %v1267 = vpop.f32.mrb[0].mxu0
      %v1268 = vadd.f32 %v1180, %v1267
      %v1269 = vpop.f32.mrb[0].mxu0
      %v1270 = vadd.f32 %v1180, %v1269
      %1271 = vmatprep.mubr.bf16.mxu0 %v1216
      %1272 = vmatmul.mubr.bf16.gmra.mrb[0].mxu0 %v1215
      %v1273 = vpop.f32.mrb[0].mxu0
      %v1274 = vadd.f32 %v1185, %v1273
      %v1275 = vpop.f32.mrb[0].mxu0
      %v1276 = vadd.f32 %v1185, %v1275
      %v1277 = vpop.f32.mrb[0].mxu0
      %v1278 = vadd.f32 %v1190, %v1277
      %v1279 = vpop.f32.mrb[0].mxu0
      %v1280 = vadd.f32 %v1190, %v1279
      %1281 = vdwg.mxu0
      %1282 = vmatprep.subr.bf16.mxu0 %v1165
      %1283 = vmatpush1.bf16.msra.mxu0 %v1164
      %1284 = vmatprep.subr.bf16.mxu0 %v1167
      %1285 = vmatpush1.bf16.msra.mxu0 %v1166
      %1286 = vmatprep.subr.bf16.mxu0 0
      %1287 = vmatpush1.bf16.msra.mxu0 0
      %1288 = vmatprep.subr.bf16.mxu0 0
      %1289 = vmatpush1.bf16.msra.mxu0 0
      %1290 = vmatprep.subr.bf16.mxu0 0
      %1291 = vmatpush1.bf16.msra.mxu0 0
      %1292 = vmatprep.subr.bf16.mxu0 0
      %1293 = vmatpush1.bf16.msra.mxu0 0
      %1294 = vmatprep.subr.bf16.mxu0 0
      %1295 = vmatpush1.bf16.msra.mxu0 0
      %1296 = vmatprep.subr.bf16.mxu0 0
      %1297 = vmatpush1.bf16.msra.mxu0 0
      %1298 = vmatprep.subr.bf16.mxu0 0
      %1299 = vmatpush1.bf16.msra.mxu0 0
      %1300 = vmatprep.subr.bf16.mxu0 0
      %1301 = vmatpush1.bf16.msra.mxu0 0
      %1302 = vmatprep.subr.bf16.mxu0 0
      %1303 = vmatpush1.bf16.msra.mxu0 0
      %1304 = vmatprep.subr.bf16.mxu0 0
      %1305 = vmatpush1.bf16.msra.mxu0 0
      %1306 = vmatprep.subr.bf16.mxu0 0
      %1307 = vmatpush1.bf16.msra.mxu0 0
      %1308 = vmatprep.subr.bf16.mxu0 0
      %1309 = vmatpush1.bf16.msra.mxu0 0
      %1310 = vmatprep.subr.bf16.mxu0 0
      %1311 = vmatpush1.bf16.msra.mxu0 0
      %1312 = vmatprep.subr.bf16.mxu0 0
      %1313 = vmatpush1.bf16.msra.mxu0 0
      %1314 = vmatprep.mubr.bf16.mxu0 0
      %1315 = vmatmul.mubr.bf16.gmra.mrb[0].mxu0 %v1224
      %v1316 = vpop.f32.mrb[0].mxu0
      %v1317 = vadd.f32 %v1264, %v1316
      %v1318 = vpop.f32.mrb[0].mxu0
      %v1319 = vadd.f32 %v1266, %v1318
      %v1320 = vpop.f32.mrb[0].mxu0
      %v1321 = vadd.f32 %v1268, %v1320
      %v1322 = vpop.f32.mrb[0].mxu0
      %v1323 = vadd.f32 %v1270, %v1322
      %1324 = vmatprep.mubr.bf16.mxu0 0
      %1325 = vmatmul.mubr.bf16.gmra.mrb[0].mxu0 %v1227
      %v1326 = vpop.f32.mrb[0].mxu0
      %v1327 = vadd.f32 %v1274, %v1326
      %v1328 = vpop.f32.mrb[0].mxu0
      %v1329 = vadd.f32 %v1276, %v1328
      %v1330 = vpop.f32.mrb[0].mxu0
      %v1331 = vadd.f32 %v1278, %v1330
      %v1332 = vpop.f32.mrb[0].mxu0
      %v1333 = vadd.f32 %v1280, %v1332
      %1334 = vdwg.mxu0
      %1335 = vst [vmem:[%s251] sm:$0xff] %v1317
      %1336 = vst [vmem:[%s251 + $0x8] sm:$0xff] %v1319
      %1337 = vst [vmem:[%s251 + $0x10] sm:$0xff] %v1321
      %1338 = vst [vmem:[%s251 + $0x18] sm:$0xff] %v1323
      %1339 = vst [vmem:[%s251 + $0x20] sm:$0xff] %v1327
      %1340 = vst [vmem:[%s251 + $0x28] sm:$0xff] %v1329
      %1341 = vst [vmem:[%s251 + $0x30] sm:$0xff] %v1331
      %1342 = vst [vmem:[%s251 + $0x38] sm:$0xff] %v1333
      %p1343 = scmp.lt.s32.totalorder %s17, 1
      %s1344 = scalar_select %p1343, %s17, 1
      %s1345 = smul.addr %s1344, 8
      %s1346 = smul.addr %s1345, 8
      %s1347 = scalar_lea.vmem %s6, %s1346
      // Predicated region
      $region45: #{potential_block.1} parent=43 // pred_check
        %p1348 = pneg %p166
      $region46: #{potential_block.1} parent=43 // pred_check_branch
        %1350 = sbr.rel (%p1348) target = $region48
      $region47: #{potential_block.1} parent=43 // pred_region
        _
      $region48: #{potential_block.1} parent=43 // pred_fallthru
        _
    $region44: #{potential_block.1} parent=5 // pred_fallthru
      _
    %p1351 = scmp.le.s32.totalorder 2, %s12
    // Predicated region
    $region49: #{potential_block.1} parent=5 // pred_check
      %p1352 = pneg %p1351
    $region50: #{potential_block.1} parent=5 // pred_check_branch
      %1354 = sbr.rel (%p1352) target = $region52
    $region51: #{potential_block.1} parent=5 // pred_region
      %s1355 = ssub.s32 %s12, 2
      // Predicated region
      $region53: #{potential_block.1} parent=51 // pred_check
        %p1356 = pneg %p172
      $region54: #{potential_block.1} parent=51 // pred_check_branch
        %1358 = sbr.rel (%p1356) target = $region56
      $region55: #{potential_block.1} parent=51 // pred_region
        %p1359 = scmp.lt.s32.totalorder %s18, 1
        %s1360 = scalar_select %p1359, %s18, 1
        %s1361 = smul.addr %s1360, 8
        %s1362 = smul.addr %s1361, 8
        %s1363 = scalar_lea.vmem %s6, %s1362
      $region56: #{potential_block.1} parent=51 // pred_fallthru
        _
    $region52: #{potential_block.1} parent=5 // pred_fallthru
      _
  $region6: #{potential_block.1} parent=0 // loop_footer
    %s16 = sadd.s32 1, %s12
  $region7: #{potential_block.1} parent=0 // loop_footer_branch
    %11 = sbr.rel target = $region3
  $region8: #{potential_block.1} parent=0 // loop_exit
    _

</llo_original>
